<compile_context>
chip_gen: v6e
topology: v6e:2x2x1
jax: 0.10.0
libtpu: 0.0.40
codegen_flags: <defaults>
</compile_context>

<pallas_src>
import jax
import jax.numpy as jnp
from jax.experimental import pallas as pl
from jax.experimental.pallas import tpu as pltpu

BN_EPS = 1e-5
LANE = 128
NEG_BIG = -1e30  # bias for padded classifier columns -> exp() == 0


def _bn_relu(h, gamma, beta):
    """Training-mode BatchNorm1d (batch stats, biased var) + ReLU.

    One pass over h (sum and sum-of-squares), then a fused per-feature
    scale/shift: h*scale + shift, followed by ReLU.
    """
    inv_b = 1.0 / h.shape[0]
    mean = jnp.sum(h, axis=0, keepdims=True) * inv_b
    msq = jnp.sum(h * h, axis=0, keepdims=True) * inv_b
    var = jnp.maximum(msq - mean * mean, 0.0)
    scale = jax.lax.rsqrt(var + BN_EPS) * gamma
    shift = beta - mean * scale
    return jnp.maximum(h * scale + shift, 0.0)


def lip2t_fc_kernel(
    x_ref,
    w1_ref, g1_ref, be1_ref,
    w2_ref, g2_ref, be2_ref,
    w3_ref, g3_ref, be3_ref,
    w4_ref, b4_ref,
    o_ref,
):
    # Pre-BN Linear biases (b1..b3) are intentionally dropped: they cancel
    # exactly against the batch-mean subtraction of training-mode BN.

    # Layer 1: Linear(face_emb, 256) -> BN -> ReLU.  bf16 x bf16 MXU matmul,
    # f32 accumulation; all BN / activation math stays f32 on the VPU.
    h = jnp.dot(x_ref[...].astype(jnp.bfloat16), w1_ref[...],
                preferred_element_type=jnp.float32)
    h = _bn_relu(h, g1_ref[...], be1_ref[...])

    # Layer 2: Linear(256, 512) -> BN -> ReLU
    h = jnp.dot(h.astype(jnp.bfloat16), w2_ref[...],
                preferred_element_type=jnp.float32)
    h = _bn_relu(h, g2_ref[...], be2_ref[...])

    # Layer 3: Linear(512, 512) -> BN -> ReLU
    h = jnp.dot(h.astype(jnp.bfloat16), w3_ref[...],
                preferred_element_type=jnp.float32)
    h = _bn_relu(h, g3_ref[...], be3_ref[...])

    # Layer 4: Linear(512, n_pad) -> Softmax.  Padded columns carry a huge
    # negative bias so they contribute exactly 0 to the softmax.
    logits = jnp.dot(h.astype(jnp.bfloat16), w4_ref[...],
                     preferred_element_type=jnp.float32) + b4_ref[...]
    m = jnp.max(logits, axis=-1, keepdims=True)
    e = jnp.exp(logits - m)
    denom = jnp.sum(e, axis=-1, keepdims=True)
    # EUP approximate reciprocal + one Newton step -> full f32 accuracy
    # without a VPU divide sequence.
    r = pl.reciprocal(denom, approx=True)
    r = r * (2.0 - denom * r)
    o_ref[...] = (e * r).astype(o_ref.dtype)


def prepare_params(params):
    """One-time weight preparation (hoisted out of the per-call path).

    bf16-casts the weights (halves HBM traffic / VMEM footprint), pads the
    classifier to a lane-dense 128-multiple width and builds the padded bias
    with NEG_BIG in the padded columns.  Call once; reuse the result.
    """
    n_class = params["w4"].shape[1]
    n_pad = max(LANE, pl.cdiv(n_class, LANE) * LANE)

    w4 = jnp.zeros((params["w4"].shape[0], n_pad), jnp.bfloat16)
    w4 = w4.at[:, :n_class].set(params["w4"].astype(jnp.bfloat16))
    b4 = jnp.full((1, n_pad), NEG_BIG, jnp.float32)
    b4 = b4.at[:, :n_class].set(params["b4"].reshape(1, n_class).astype(jnp.float32))

    prepared = {
        "w1": params["w1"].astype(jnp.bfloat16),
        "w2": params["w2"].astype(jnp.bfloat16),
        "w3": params["w3"].astype(jnp.bfloat16),
        "w4": w4,
        "b4": b4,
        "g1": params["g1"].astype(jnp.float32),
        "be1": params["be1"].astype(jnp.float32),
        "g2": params["g2"].astype(jnp.float32),
        "be2": params["be2"].astype(jnp.float32),
        "g3": params["g3"].astype(jnp.float32),
        "be3": params["be3"].astype(jnp.float32),
        "n_class": n_class,
        "n_pad": n_pad,
    }
    return prepared


def lip2t_fc_forward_padded(x, prep):
    """Hot path. x: [B, face_emb] f32; prep: output of prepare_params().

    Returns [B, n_pad] f32 softmax; columns >= n_class are exactly 0.
    """
    B, face_emb = x.shape
    n_pad = prep["n_pad"]

    args = (
        x.astype(jnp.float32),
        prep["w1"], prep["g1"], prep["be1"],
        prep["w2"], prep["g2"], prep["be2"],
        prep["w3"], prep["g3"], prep["be3"],
        prep["w4"], prep["b4"],
    )

    d1, d2, d3 = 256, 512, 512
    flops = 2 * B * (face_emb * d1 + d1 * d2 + d2 * d3 + d3 * n_pad)
    transcendentals = B * n_pad + (d1 + d2 + d3) + B   # exp + rsqrt + recip
    bytes_accessed = (
        x.size * 4
        + (prep["w1"].size + prep["w2"].size + prep["w3"].size + prep["w4"].size) * 2
        + prep["b4"].size * 4
        + sum(prep[k].size for k in ("g1", "be1", "g2", "be2", "g3", "be3")) * 4
        + B * n_pad * 4
    )

    vmem_spec = pl.BlockSpec(memory_space=pltpu.MemorySpace.VMEM)
    return pl.pallas_call(
        lip2t_fc_kernel,
        out_shape=jax.ShapeDtypeStruct((B, n_pad), jnp.float32),
        in_specs=[vmem_spec] * len(args),
        out_specs=vmem_spec,
        cost_estimate=pl.CostEstimate(
            flops=flops,
            transcendentals=transcendentals,
            bytes_accessed=bytes_accessed,
        ),
        compiler_params=pltpu.CompilerParams(vmem_limit_bytes=4 << 20),
    )(*args)


def lip2t_fc_forward(x, prep):
    """API-compatible forward: returns [B, n_class] (slices the padded output).
    Prefer lip2t_fc_forward_padded + downstream fusion when the consumer can
    handle the lane-dense 128-wide slab (padded columns are exactly 0)."""
    return lip2t_fc_forward_padded(x, prep)[:, : prep["n_class"]]


def init_params(key, face_emb, n_class):
    """Deterministic init mimicking PyTorch Linear default U(-1/sqrt(fan_in), +)."""
    dims = [(face_emb, 256), (256, 512), (512, 512), (512, n_class)]
    params = {}
    keys = jax.random.split(key, 2 * len(dims))
    for i, (din, dout) in enumerate(dims):
        bound = 1.0 / jnp.sqrt(jnp.float32(din))
        w = jax.random.uniform(keys[2 * i], (din, dout), jnp.float32, -bound, bound)
        b = jax.random.uniform(keys[2 * i + 1], (1, dout), jnp.float32, -bound, bound)
        params[f"w{i+1}"] = w
        params[f"b{i+1}"] = b
    # BatchNorm affine params (gamma=1, beta=0) for the first three layers.
    for i, dout in enumerate([256, 512, 512]):
        params[f"g{i+1}"] = jnp.ones((1, dout), jnp.float32)
        params[f"be{i+1}"] = jnp.zeros((1, dout), jnp.float32)
    return params


def reference_forward(x, params):
    """Pure-JAX reference with full PyTorch semantics (biases b1..b3 included,
    two-pass BN stats).  Matmuls are routed through bf16 inputs with f32
    accumulation to mirror the kernel's MXU precision; everything else f32."""
    def mm(a, w):
        return jnp.dot(a.astype(jnp.bfloat16), w.astype(jnp.bfloat16),
                       preferred_element_type=jnp.float32)

    h = x
    for i in range(1, 4):
        h = mm(h, params[f"w{i}"]) + params[f"b{i}"]
        mean = jnp.mean(h, axis=0, keepdims=True)
        var = jnp.mean((h - mean) ** 2, axis=0, keepdims=True)
        h = (h - mean) / jnp.sqrt(var + BN_EPS) * params[f"g{i}"] + params[f"be{i}"]
        h = jnp.maximum(h, 0.0)
    logits = mm(h, params["w4"]) + params["b4"]
    return jax.nn.softmax(logits, axis=-1)


if __name__ == "__main__":
    B, FACE_EMB, N_CLASS = 8, 32, 16

    key = jax.random.PRNGKey(0)
    k_params, k_x = jax.random.split(key)
    params = init_params(k_params, FACE_EMB, N_CLASS)
    x = jax.random.normal(k_x, (B, FACE_EMB), jnp.float32)

    # One-time weight prep (bf16 cast + classifier pad), outside the hot path.
    prep = jax.tree.map(jax.block_until_ready,
                        {k: v for k, v in prepare_params(params).items()
                         if isinstance(v, jnp.ndarray)})
    prep["n_class"] = N_CLASS
    prep["n_pad"] = max(LANE, pl.cdiv(N_CLASS, LANE) * LANE)

    out_pad = lip2t_fc_forward_padded(x, prep)
    out_pad = jax.block_until_ready(out_pad)
    out = out_pad[:, :N_CLASS]

    ref = reference_forward(x, params)
    assert out.shape == (B, N_CLASS)
    # Padded columns must be exactly zero and rows must sum to 1.
    assert jnp.all(out_pad[:, N_CLASS:] == 0.0)
    assert jnp.allclose(jnp.sum(out, axis=-1), 1.0, atol=1e-5)
    # Kernel drops the (mathematically cancelling) pre-BN biases, uses the
    # single-pass E[x^2]-mean^2 variance and bf16 MXU inputs; reference uses
    # the same matmul precision, so remaining deltas are rounding-level.
    assert jnp.allclose(out, ref, atol=2e-3, rtol=2e-2)

    print("KERNEL_OK")
</pallas_src>

<mosaic_0001>
module attributes {stable_mosaic.version = 11 : i64} {
  func.func @lip2t_fc_kernel(%arg0: memref<8x32xf32, #tpu.memory_space<vmem>>, %arg1: memref<32x256xbf16, #tpu.memory_space<vmem>>, %arg2: memref<1x256xf32, #tpu.memory_space<vmem>>, %arg3: memref<1x256xf32, #tpu.memory_space<vmem>>, %arg4: memref<256x512xbf16, #tpu.memory_space<vmem>>, %arg5: memref<1x512xf32, #tpu.memory_space<vmem>>, %arg6: memref<1x512xf32, #tpu.memory_space<vmem>>, %arg7: memref<512x512xbf16, #tpu.memory_space<vmem>>, %arg8: memref<1x512xf32, #tpu.memory_space<vmem>>, %arg9: memref<1x512xf32, #tpu.memory_space<vmem>>, %arg10: memref<512x128xbf16, #tpu.memory_space<vmem>>, %arg11: memref<1x128xf32, #tpu.memory_space<vmem>>, %arg12: memref<8x128xf32, #tpu.memory_space<vmem>>) attributes {dimension_semantics = [], scalar_prefetch = 0 : i64, scratch_operands = 0 : i64, tpu.core_type = #tpu.core_type<tc>} {
    %c0 = arith.constant 0 : index
    %c0_0 = arith.constant 0 : index
    %0 = vector.load %arg0[%c0, %c0_0] : memref<8x32xf32, #tpu.memory_space<vmem>>, vector<8x32xf32>
    %1 = arith.truncf %0 : vector<8x32xf32> to vector<8x32xbf16>
    %c0_1 = arith.constant 0 : index
    %c0_2 = arith.constant 0 : index
    %2 = vector.load %arg1[%c0_1, %c0_2] : memref<32x256xbf16, #tpu.memory_space<vmem>>, vector<32x256xbf16>
    %cst = arith.constant dense<0.000000e+00> : vector<8x256xf32>
    %3 = tpu.matmul %1, %2, %cst {dimension_numbers = #tpu.dot_dimension_numbers<[1], [0], [0], [1], [0, 0, 1, 1], [], []>} : vector<8x32xbf16>, vector<32x256xbf16>, vector<8x256xf32> -> vector<8x256xf32>
    %c0_3 = arith.constant 0 : index
    %c0_4 = arith.constant 0 : index
    %4 = vector.load %arg2[%c0_3, %c0_4] : memref<1x256xf32, #tpu.memory_space<vmem>>, vector<1x256xf32>
    %c0_5 = arith.constant 0 : index
    %c0_6 = arith.constant 0 : index
    %5 = vector.load %arg3[%c0_5, %c0_6] : memref<1x256xf32, #tpu.memory_space<vmem>>, vector<1x256xf32>
    %cst_7 = arith.constant dense<0.000000e+00> : vector<256xf32>
    %6 = vector.multi_reduction <add>, %3, %cst_7 [0] : vector<8x256xf32> to vector<256xf32>
    %7 = vector.shape_cast %6 : vector<256xf32> to vector<1x256xf32>
    %cst_8 = arith.constant 1.250000e-01 : f32
    %8 = vector.broadcast %cst_8 : f32 to vector<1x256xf32>
    %9 = arith.mulf %7, %8 : vector<1x256xf32>
    %10 = arith.mulf %3, %3 : vector<8x256xf32>
    %cst_9 = arith.constant dense<0.000000e+00> : vector<256xf32>
    %11 = vector.multi_reduction <add>, %10, %cst_9 [0] : vector<8x256xf32> to vector<256xf32>
    %12 = vector.shape_cast %11 : vector<256xf32> to vector<1x256xf32>
    %cst_10 = arith.constant 1.250000e-01 : f32
    %13 = vector.broadcast %cst_10 : f32 to vector<1x256xf32>
    %14 = arith.mulf %12, %13 : vector<1x256xf32>
    %15 = arith.mulf %9, %9 : vector<1x256xf32>
    %16 = arith.subf %14, %15 : vector<1x256xf32>
    %cst_11 = arith.constant 0.000000e+00 : f32
    %17 = vector.broadcast %cst_11 : f32 to vector<1x256xf32>
    %18 = arith.maximumf %16, %17 : vector<1x256xf32>
    %cst_12 = arith.constant 9.99999974E-6 : f32
    %19 = vector.broadcast %cst_12 : f32 to vector<1x256xf32>
    %20 = arith.addf %18, %19 : vector<1x256xf32>
    %21 = math.rsqrt %20 : vector<1x256xf32>
    %22 = arith.mulf %21, %4 : vector<1x256xf32>
    %23 = arith.mulf %9, %22 : vector<1x256xf32>
    %24 = arith.subf %5, %23 : vector<1x256xf32>
    %25 = vector.broadcast %22 : vector<1x256xf32> to vector<8x256xf32>
    %26 = arith.mulf %3, %25 : vector<8x256xf32>
    %27 = vector.broadcast %24 : vector<1x256xf32> to vector<8x256xf32>
    %28 = arith.addf %26, %27 : vector<8x256xf32>
    %cst_13 = arith.constant 0.000000e+00 : f32
    %29 = vector.broadcast %cst_13 : f32 to vector<8x256xf32>
    %30 = arith.maximumf %28, %29 : vector<8x256xf32>
    %31 = arith.truncf %30 : vector<8x256xf32> to vector<8x256xbf16>
    %c0_14 = arith.constant 0 : index
    %c0_15 = arith.constant 0 : index
    %32 = vector.load %arg4[%c0_14, %c0_15] : memref<256x512xbf16, #tpu.memory_space<vmem>>, vector<256x512xbf16>
    %cst_16 = arith.constant dense<0.000000e+00> : vector<8x512xf32>
    %33 = tpu.matmul %31, %32, %cst_16 {dimension_numbers = #tpu.dot_dimension_numbers<[1], [0], [0], [1], [0, 0, 1, 1], [], []>} : vector<8x256xbf16>, vector<256x512xbf16>, vector<8x512xf32> -> vector<8x512xf32>
    %c0_17 = arith.constant 0 : index
    %c0_18 = arith.constant 0 : index
    %34 = vector.load %arg5[%c0_17, %c0_18] : memref<1x512xf32, #tpu.memory_space<vmem>>, vector<1x512xf32>
    %c0_19 = arith.constant 0 : index
    %c0_20 = arith.constant 0 : index
    %35 = vector.load %arg6[%c0_19, %c0_20] : memref<1x512xf32, #tpu.memory_space<vmem>>, vector<1x512xf32>
    %cst_21 = arith.constant dense<0.000000e+00> : vector<512xf32>
    %36 = vector.multi_reduction <add>, %33, %cst_21 [0] : vector<8x512xf32> to vector<512xf32>
    %37 = vector.shape_cast %36 : vector<512xf32> to vector<1x512xf32>
    %cst_22 = arith.constant 1.250000e-01 : f32
    %38 = vector.broadcast %cst_22 : f32 to vector<1x512xf32>
    %39 = arith.mulf %37, %38 : vector<1x512xf32>
    %40 = arith.mulf %33, %33 : vector<8x512xf32>
    %cst_23 = arith.constant dense<0.000000e+00> : vector<512xf32>
    %41 = vector.multi_reduction <add>, %40, %cst_23 [0] : vector<8x512xf32> to vector<512xf32>
    %42 = vector.shape_cast %41 : vector<512xf32> to vector<1x512xf32>
    %cst_24 = arith.constant 1.250000e-01 : f32
    %43 = vector.broadcast %cst_24 : f32 to vector<1x512xf32>
    %44 = arith.mulf %42, %43 : vector<1x512xf32>
    %45 = arith.mulf %39, %39 : vector<1x512xf32>
    %46 = arith.subf %44, %45 : vector<1x512xf32>
    %cst_25 = arith.constant 0.000000e+00 : f32
    %47 = vector.broadcast %cst_25 : f32 to vector<1x512xf32>
    %48 = arith.maximumf %46, %47 : vector<1x512xf32>
    %cst_26 = arith.constant 9.99999974E-6 : f32
    %49 = vector.broadcast %cst_26 : f32 to vector<1x512xf32>
    %50 = arith.addf %48, %49 : vector<1x512xf32>
    %51 = math.rsqrt %50 : vector<1x512xf32>
    %52 = arith.mulf %51, %34 : vector<1x512xf32>
    %53 = arith.mulf %39, %52 : vector<1x512xf32>
    %54 = arith.subf %35, %53 : vector<1x512xf32>
    %55 = vector.broadcast %52 : vector<1x512xf32> to vector<8x512xf32>
    %56 = arith.mulf %33, %55 : vector<8x512xf32>
    %57 = vector.broadcast %54 : vector<1x512xf32> to vector<8x512xf32>
    %58 = arith.addf %56, %57 : vector<8x512xf32>
    %cst_27 = arith.constant 0.000000e+00 : f32
    %59 = vector.broadcast %cst_27 : f32 to vector<8x512xf32>
    %60 = arith.maximumf %58, %59 : vector<8x512xf32>
    %61 = arith.truncf %60 : vector<8x512xf32> to vector<8x512xbf16>
    %c0_28 = arith.constant 0 : index
    %c0_29 = arith.constant 0 : index
    %62 = vector.load %arg7[%c0_28, %c0_29] : memref<512x512xbf16, #tpu.memory_space<vmem>>, vector<512x512xbf16>
    %cst_30 = arith.constant dense<0.000000e+00> : vector<8x512xf32>
    %63 = tpu.matmul %61, %62, %cst_30 {dimension_numbers = #tpu.dot_dimension_numbers<[1], [0], [0], [1], [0, 0, 1, 1], [], []>} : vector<8x512xbf16>, vector<512x512xbf16>, vector<8x512xf32> -> vector<8x512xf32>
    %c0_31 = arith.constant 0 : index
    %c0_32 = arith.constant 0 : index
    %64 = vector.load %arg8[%c0_31, %c0_32] : memref<1x512xf32, #tpu.memory_space<vmem>>, vector<1x512xf32>
    %c0_33 = arith.constant 0 : index
    %c0_34 = arith.constant 0 : index
    %65 = vector.load %arg9[%c0_33, %c0_34] : memref<1x512xf32, #tpu.memory_space<vmem>>, vector<1x512xf32>
    %cst_35 = arith.constant dense<0.000000e+00> : vector<512xf32>
    %66 = vector.multi_reduction <add>, %63, %cst_35 [0] : vector<8x512xf32> to vector<512xf32>
    %67 = vector.shape_cast %66 : vector<512xf32> to vector<1x512xf32>
    %cst_36 = arith.constant 1.250000e-01 : f32
    %68 = vector.broadcast %cst_36 : f32 to vector<1x512xf32>
    %69 = arith.mulf %67, %68 : vector<1x512xf32>
    %70 = arith.mulf %63, %63 : vector<8x512xf32>
    %cst_37 = arith.constant dense<0.000000e+00> : vector<512xf32>
    %71 = vector.multi_reduction <add>, %70, %cst_37 [0] : vector<8x512xf32> to vector<512xf32>
    %72 = vector.shape_cast %71 : vector<512xf32> to vector<1x512xf32>
    %cst_38 = arith.constant 1.250000e-01 : f32
    %73 = vector.broadcast %cst_38 : f32 to vector<1x512xf32>
    %74 = arith.mulf %72, %73 : vector<1x512xf32>
    %75 = arith.mulf %69, %69 : vector<1x512xf32>
    %76 = arith.subf %74, %75 : vector<1x512xf32>
    %cst_39 = arith.constant 0.000000e+00 : f32
    %77 = vector.broadcast %cst_39 : f32 to vector<1x512xf32>
    %78 = arith.maximumf %76, %77 : vector<1x512xf32>
    %cst_40 = arith.constant 9.99999974E-6 : f32
    %79 = vector.broadcast %cst_40 : f32 to vector<1x512xf32>
    %80 = arith.addf %78, %79 : vector<1x512xf32>
    %81 = math.rsqrt %80 : vector<1x512xf32>
    %82 = arith.mulf %81, %64 : vector<1x512xf32>
    %83 = arith.mulf %69, %82 : vector<1x512xf32>
    %84 = arith.subf %65, %83 : vector<1x512xf32>
    %85 = vector.broadcast %82 : vector<1x512xf32> to vector<8x512xf32>
    %86 = arith.mulf %63, %85 : vector<8x512xf32>
    %87 = vector.broadcast %84 : vector<1x512xf32> to vector<8x512xf32>
    %88 = arith.addf %86, %87 : vector<8x512xf32>
    %cst_41 = arith.constant 0.000000e+00 : f32
    %89 = vector.broadcast %cst_41 : f32 to vector<8x512xf32>
    %90 = arith.maximumf %88, %89 : vector<8x512xf32>
    %91 = arith.truncf %90 : vector<8x512xf32> to vector<8x512xbf16>
    %c0_42 = arith.constant 0 : index
    %c0_43 = arith.constant 0 : index
    %92 = vector.load %arg10[%c0_42, %c0_43] : memref<512x128xbf16, #tpu.memory_space<vmem>>, vector<512x128xbf16>
    %cst_44 = arith.constant dense<0.000000e+00> : vector<8x128xf32>
    %93 = tpu.matmul %91, %92, %cst_44 {dimension_numbers = #tpu.dot_dimension_numbers<[1], [0], [0], [1], [0, 0, 1, 1], [], []>} : vector<8x512xbf16>, vector<512x128xbf16>, vector<8x128xf32> -> vector<8x128xf32>
    %c0_45 = arith.constant 0 : index
    %c0_46 = arith.constant 0 : index
    %94 = vector.load %arg11[%c0_45, %c0_46] : memref<1x128xf32, #tpu.memory_space<vmem>>, vector<1x128xf32>
    %95 = vector.broadcast %94 : vector<1x128xf32> to vector<8x128xf32>
    %96 = arith.addf %93, %95 : vector<8x128xf32>
    %cst_47 = arith.constant dense<0xFF800000> : vector<8xf32>
    %97 = vector.multi_reduction <maximumf>, %96, %cst_47 [1] : vector<8x128xf32> to vector<8xf32>
    %98 = vector.shape_cast %97 : vector<8xf32> to vector<8x1xf32>
    %99 = vector.broadcast %98 : vector<8x1xf32> to vector<8x128xf32>
    %100 = arith.subf %96, %99 : vector<8x128xf32>
    %101 = math.exp %100 : vector<8x128xf32>
    %cst_48 = arith.constant dense<0.000000e+00> : vector<8xf32>
    %102 = vector.multi_reduction <add>, %101, %cst_48 [1] : vector<8x128xf32> to vector<8xf32>
    %103 = vector.shape_cast %102 : vector<8xf32> to vector<8x1xf32>
    %104 = tpu.reciprocal %103 {approx = true} : vector<8x1xf32> -> vector<8x1xf32>
    %105 = arith.mulf %103, %104 : vector<8x1xf32>
    %cst_49 = arith.constant 2.000000e+00 : f32
    %106 = vector.broadcast %cst_49 : f32 to vector<8x1xf32>
    %107 = arith.subf %106, %105 : vector<8x1xf32>
    %108 = arith.mulf %104, %107 : vector<8x1xf32>
    %109 = vector.broadcast %108 : vector<8x1xf32> to vector<8x128xf32>
    %110 = arith.mulf %101, %109 : vector<8x128xf32>
    %c0_50 = arith.constant 0 : index
    %c0_51 = arith.constant 0 : index
    %111 = vector.load %arg12[%c0_50, %c0_51] : memref<8x128xf32, #tpu.memory_space<vmem>>, vector<8x128xf32>
    tpu.vector_store %arg12[%c0_50, %c0_51], %110 {strides = array<i32>} : memref<8x128xf32, #tpu.memory_space<vmem>>, vector<8x128xf32>,
    return
  }
}

</mosaic_0001>

<llo_original>
// kernel: tpu_custom_call.1
$region0: #{tpu_custom_call.1}
  #allocation0 [shape = 'u32[]', space=smem, size = 0x4, offset = 0x4, fixed_abs, tag = 'smem constant byte address 0x4 - core index']
  #allocation1 [shape = 'u32[144,128]{1,0:T(1,128)}', space=vmem, size = 0x12000, scoped, tag = 'internal scratch']
  %s0 = inlined_call_operand.hbm [shape: f32[8,32], index: 0, kind: input, shape index: {}]
  %s1 = inlined_call_operand.hbm [shape: bf16[32,256], index: 1, kind: input, shape index: {}]
  %s2 = inlined_call_operand.hbm [shape: f32[1,256], index: 2, kind: input, shape index: {}]
  %s3 = inlined_call_operand.hbm [shape: f32[1,256], index: 3, kind: input, shape index: {}]
  %s4 = inlined_call_operand.hbm [shape: bf16[256,512], index: 4, kind: input, shape index: {}]
  %s5 = inlined_call_operand.vmem [shape: f32[1,512], index: 5, kind: input, shape index: {}]
  %s6 = inlined_call_operand.vmem [shape: f32[1,512], index: 6, kind: input, shape index: {}]
  %s7 = inlined_call_operand.hbm [shape: bf16[512,512], index: 7, kind: input, shape index: {}]
  %s8 = inlined_call_operand.vmem [shape: f32[1,512], index: 8, kind: input, shape index: {}]
  %s9 = inlined_call_operand.vmem [shape: f32[1,512], index: 9, kind: input, shape index: {}]
  %s10 = inlined_call_operand.hbm [shape: bf16[512,128], index: 10, kind: input, shape index: {}]
  %s11 = inlined_call_operand.vmem [shape: f32[1,128], index: 11, kind: input, shape index: {}]
  %s12 = inlined_call_operand.hbm [shape: f32[8,128], index: 12, kind: output, shape index: {}]
  %s13 = sld [smem:[#allocation0]]
  $region86: #{tpu_custom_call.1} parent=0
    _
  %s15 = ssub.s32 1, %s13
  %s16 = scalar_select 0, %s15, %s13
  $region1: #{tpu_custom_call.1} parent=0
    #allocation2 [shape = 'u8[4096]{0}', space=vmem, size = 0x1000, scoped, tag = 'input window, operand 0, single buffered']
    #allocation3 [shape = 's32[1]{0}', space=sflag, size = 0x4, scoped, tag = 'scoped memory for tpu_custom_call.1']
    #allocation4 [shape = 's32[1]{0}', space=sflag, size = 0x4, scoped, tag = 'scoped memory for tpu_custom_call.1']
    #allocation5 [shape = 'u8[16384]{0}', space=vmem, size = 0x4000, scoped, tag = 'input window, operand 1, single buffered']
    #allocation6 [shape = 's32[1]{0}', space=sflag, size = 0x4, scoped, tag = 'scoped memory for tpu_custom_call.1']
    #allocation7 [shape = 'u8[1024]{0}', space=vmem, size = 0x400, scoped, tag = 'input window, operand 2, single buffered']
    #allocation8 [shape = 'u8[1024]{0}', space=vmem, size = 0x400, scoped, tag = 'input window, operand 3, single buffered']
    #allocation9 [shape = 's32[1]{0}', space=sflag, size = 0x4, scoped, tag = 'scoped memory for tpu_custom_call.1']
    #allocation10 [shape = 'u8[262144]{0}', space=vmem, size = 0x40000, scoped, tag = 'input window, operand 4, single buffered']
    #allocation11 [shape = 'u8[524288]{0}', space=vmem, size = 0x80000, scoped, tag = 'input window, operand 7, single buffered']
    #allocation12 [shape = 's32[1]{0}', space=sflag, size = 0x4, scoped, tag = 'scoped memory for tpu_custom_call.1']
    #allocation13 [shape = 'u8[131072]{0}', space=vmem, size = 0x20000, scoped, tag = 'input window, operand 10, single buffered']
    #allocation14 [shape = 'u8[4096]{0}', space=vmem, size = 0x1000, scoped, tag = 'output window, operand 0, single buffered']
    %17 = vsyncpa [#allocation3], 0
    %18 = vsyncpa [#allocation6], 0
    %19 = vsyncpa [#allocation9], 0
    %20 = vsyncpa [#allocation12], 0
    %21 = vsyncpa [#allocation4], 0
    // Predicated region
    $region2: #{tpu_custom_call.1} parent=1 // pred_check
      _
    $region3: #{tpu_custom_call.1} parent=1 // pred_check_branch
      %23 = sbr.rel (0) target = $region5
    $region4: #{tpu_custom_call.1} parent=1 // pred_region
      %s25 = ssub.s32 128, 128
      %26 = vsyncadd [#allocation3], %s25
      %s28 = sshll.u32 [#allocation2], 4
      %s29 = int_to_ptr.vmem [resolvable:$true] %s28
      %31 = dma.hbm_to_vmem [thread:$0]  %s0, 128, %s29, [#allocation3]
    $region5: #{tpu_custom_call.1} parent=1 // pred_fallthru
      _
    // Predicated region
    $region6: #{tpu_custom_call.1} parent=1 // pred_check
      _
    $region7: #{tpu_custom_call.1} parent=1 // pred_check_branch
      %33 = sbr.rel (0) target = $region9
    $region8: #{tpu_custom_call.1} parent=1 // pred_region
      %s35 = ssub.s32 512, 512
      %36 = vsyncadd [#allocation6], %s35
      %s37 = sshll.u32 [#allocation5], 4
      %s38 = int_to_ptr.vmem [resolvable:$true] %s37
      %43 = dma.hbm_to_vmem [thread:$0]  %s1, 512, %s38, [#allocation6], 128, 128, 8
    $region9: #{tpu_custom_call.1} parent=1 // pred_fallthru
      _
    // Predicated region
    $region10: #{tpu_custom_call.1} parent=1 // pred_check
      _
    $region11: #{tpu_custom_call.1} parent=1 // pred_check_branch
      %45 = sbr.rel (0) target = $region13
    $region12: #{tpu_custom_call.1} parent=1 // pred_region
      %s47 = ssub.s32 32, 32
      %48 = vsyncadd [#allocation6], %s47
      %s50 = sshll.u32 [#allocation7], 4
      %s51 = int_to_ptr.vmem [resolvable:$true] %s50
      %53 = dma.hbm_to_vmem [thread:$0]  %s2, 32, %s51, [#allocation6]
    $region13: #{tpu_custom_call.1} parent=1 // pred_fallthru
      _
    // Predicated region
    $region14: #{tpu_custom_call.1} parent=1 // pred_check
      _
    $region15: #{tpu_custom_call.1} parent=1 // pred_check_branch
      %55 = sbr.rel (0) target = $region17
    $region16: #{tpu_custom_call.1} parent=1 // pred_region
      %s57 = ssub.s32 32, 32
      %58 = vsyncadd [#allocation9], %s57
      %s60 = sshll.u32 [#allocation8], 4
      %s61 = int_to_ptr.vmem [resolvable:$true] %s60
      %63 = dma.hbm_to_vmem [thread:$0]  %s3, 32, %s61, [#allocation9]
    $region17: #{tpu_custom_call.1} parent=1 // pred_fallthru
      _
    // Predicated region
    $region18: #{tpu_custom_call.1} parent=1 // pred_check
      _
    $region19: #{tpu_custom_call.1} parent=1 // pred_check_branch
      %65 = sbr.rel (0) target = $region21
    $region20: #{tpu_custom_call.1} parent=1 // pred_region
      %s67 = ssub.s32 8192, 8192
      %68 = vsyncadd [#allocation9], %s67
      %s69 = sshll.u32 [#allocation10], 4
      %s70 = int_to_ptr.vmem [resolvable:$true] %s69
      %75 = dma.hbm_to_vmem [thread:$0]  %s4, 8192, %s70, [#allocation9], 256, 256, 16
    $region21: #{tpu_custom_call.1} parent=1 // pred_fallthru
      _
    // Predicated region
    $region22: #{tpu_custom_call.1} parent=1 // pred_check
      _
    $region23: #{tpu_custom_call.1} parent=1 // pred_check_branch
      %77 = sbr.rel (0) target = $region25
    $region24: #{tpu_custom_call.1} parent=1 // pred_region
      _
    $region25: #{tpu_custom_call.1} parent=1 // pred_fallthru
      _
    // Predicated region
    $region26: #{tpu_custom_call.1} parent=1 // pred_check
      _
    $region27: #{tpu_custom_call.1} parent=1 // pred_check_branch
      %79 = sbr.rel (0) target = $region29
    $region28: #{tpu_custom_call.1} parent=1 // pred_region
      _
    $region29: #{tpu_custom_call.1} parent=1 // pred_fallthru
      _
    // Predicated region
    $region30: #{tpu_custom_call.1} parent=1 // pred_check
      _
    $region31: #{tpu_custom_call.1} parent=1 // pred_check_branch
      %81 = sbr.rel (0) target = $region33
    $region32: #{tpu_custom_call.1} parent=1 // pred_region
      %s83 = ssub.s32 16384, 16384
      %84 = vsyncadd [#allocation12], %s83
      %s85 = sshll.u32 [#allocation11], 4
      %s86 = int_to_ptr.vmem [resolvable:$true] %s85
      %91 = dma.hbm_to_vmem [thread:$0]  %s7, 16384, %s86, [#allocation12], 256, 256, 16
    $region33: #{tpu_custom_call.1} parent=1 // pred_fallthru
      _
    // Predicated region
    $region34: #{tpu_custom_call.1} parent=1 // pred_check
      _
    $region35: #{tpu_custom_call.1} parent=1 // pred_check_branch
      %93 = sbr.rel (0) target = $region37
    $region36: #{tpu_custom_call.1} parent=1 // pred_region
      _
    $region37: #{tpu_custom_call.1} parent=1 // pred_fallthru
      _
    // Predicated region
    $region38: #{tpu_custom_call.1} parent=1 // pred_check
      _
    $region39: #{tpu_custom_call.1} parent=1 // pred_check_branch
      %95 = sbr.rel (0) target = $region41
    $region40: #{tpu_custom_call.1} parent=1 // pred_region
      _
    $region41: #{tpu_custom_call.1} parent=1 // pred_fallthru
      _
    // Predicated region
    $region42: #{tpu_custom_call.1} parent=1 // pred_check
      _
    $region43: #{tpu_custom_call.1} parent=1 // pred_check_branch
      %97 = sbr.rel (0) target = $region45
    $region44: #{tpu_custom_call.1} parent=1 // pred_region
      %s99 = ssub.s32 4096, 4096
      %100 = vsyncadd [#allocation12], %s99
      %s101 = sshll.u32 [#allocation13], 4
      %s102 = int_to_ptr.vmem [resolvable:$true] %s101
      %107 = dma.hbm_to_vmem [thread:$0]  %s10, 4096, %s102, [#allocation12], 64, 64, 4
    $region45: #{tpu_custom_call.1} parent=1 // pred_fallthru
      _
    // Predicated region
    $region46: #{tpu_custom_call.1} parent=1 // pred_check
      _
    $region47: #{tpu_custom_call.1} parent=1 // pred_check_branch
      %109 = sbr.rel (0) target = $region49
    $region48: #{tpu_custom_call.1} parent=1 // pred_region
      _
    $region49: #{tpu_custom_call.1} parent=1 // pred_fallthru
      _
    // Predicated region
    $region50: #{tpu_custom_call.1} parent=1 // pred_check
      _
    $region51: #{tpu_custom_call.1} parent=1 // pred_check_branch
      %111 = sbr.rel (0) target = $region53
    $region52: #{tpu_custom_call.1} parent=1 // pred_region
      %112 = dma.done [#allocation3], 128
    $region53: #{tpu_custom_call.1} parent=1 // pred_fallthru
      _
    // Predicated region
    $region54: #{tpu_custom_call.1} parent=1 // pred_check
      _
    $region55: #{tpu_custom_call.1} parent=1 // pred_check_branch
      %114 = sbr.rel (0) target = $region57
    $region56: #{tpu_custom_call.1} parent=1 // pred_region
      %115 = dma.done [#allocation6], 512
    $region57: #{tpu_custom_call.1} parent=1 // pred_fallthru
      _
    // Predicated region
    $region58: #{tpu_custom_call.1} parent=1 // pred_check
      _
    $region59: #{tpu_custom_call.1} parent=1 // pred_check_branch
      %117 = sbr.rel (0) target = $region61
    $region60: #{tpu_custom_call.1} parent=1 // pred_region
      %118 = dma.done [#allocation6], 32
    $region61: #{tpu_custom_call.1} parent=1 // pred_fallthru
      _
    // Predicated region
    $region62: #{tpu_custom_call.1} parent=1 // pred_check
      _
    $region63: #{tpu_custom_call.1} parent=1 // pred_check_branch
      %120 = sbr.rel (0) target = $region65
    $region64: #{tpu_custom_call.1} parent=1 // pred_region
      %121 = dma.done [#allocation9], 32
    $region65: #{tpu_custom_call.1} parent=1 // pred_fallthru
      _
    // Predicated region
    $region66: #{tpu_custom_call.1} parent=1 // pred_check
      _
    $region67: #{tpu_custom_call.1} parent=1 // pred_check_branch
      %123 = sbr.rel (0) target = $region69
    $region68: #{tpu_custom_call.1} parent=1 // pred_region
      %124 = dma.done [#allocation9], 8192
    $region69: #{tpu_custom_call.1} parent=1 // pred_fallthru
      _
    // Predicated region
    $region70: #{tpu_custom_call.1} parent=1 // pred_check
      _
    $region71: #{tpu_custom_call.1} parent=1 // pred_check_branch
      %126 = sbr.rel (0) target = $region73
    $region72: #{tpu_custom_call.1} parent=1 // pred_region
      %127 = dma.done [#allocation12], 16384
    $region73: #{tpu_custom_call.1} parent=1 // pred_fallthru
      _
    // Predicated region
    $region74: #{tpu_custom_call.1} parent=1 // pred_check
      _
    $region75: #{tpu_custom_call.1} parent=1 // pred_check_branch
      %129 = sbr.rel (0) target = $region77
    $region76: #{tpu_custom_call.1} parent=1 // pred_region
      %130 = dma.done [#allocation12], 4096
    $region77: #{tpu_custom_call.1} parent=1 // pred_fallthru
      _
    %v132 = vld [vmem:[#allocation2] sm:$0xff]
    %v133 = vpack.c.bf16 %v132, %v132
    %v134 = vld [vmem:[#allocation5] sm:$0xff]
    %v135 = vld [vmem:[#allocation5 + $0x8] sm:$0xff]
    %v136 = vld [vmem:[#allocation5 + $0x10] sm:$0xff]
    %v137 = vld [vmem:[#allocation5 + $0x18] sm:$0xff]
    %v142 = vunpack.c.l.b16 %v134
    %v143 = vunpack.c.h.b16 %v134
    %v144 = vunpack.c.l.b16 %v135
    %v145 = vunpack.c.h.b16 %v135
    %v146 = vunpack.c.l.b16 %v136
    %v147 = vunpack.c.h.b16 %v136
    %v148 = vunpack.c.l.b16 %v137
    %v149 = vunpack.c.h.b16 %v137
    %v150 = vpack.c.b16 %v144, %v142
    %v151 = vpack.c.b16 %v145, %v143
    %v152 = vpack.c.b16 %v148, %v146
    %v153 = vpack.c.b16 %v149, %v147
    %vm158 = vcmask 261120
    %v160 = vsel %vm158, %v133, 0
    %162 = vmatprep.subr.bf16.mxu0 0
    %163 = vmatpush1.bf16.msra.mxu0 0
    %164 = vmatprep.subr.bf16.mxu0 0
    %165 = vmatpush1.bf16.msra.mxu0 0
    %166 = vmatprep.subr.bf16.mxu0 0
    %167 = vmatpush1.bf16.msra.mxu0 0
    %168 = vmatprep.subr.bf16.mxu0 0
    %169 = vmatpush1.bf16.msra.mxu0 0
    %170 = vmatprep.subr.bf16.mxu0 0
    %171 = vmatpush1.bf16.msra.mxu0 0
    %172 = vmatprep.subr.bf16.mxu0 0
    %173 = vmatpush1.bf16.msra.mxu0 0
    %174 = vmatprep.subr.bf16.mxu0 %v153
    %175 = vmatpush1.bf16.msra.mxu0 %v152
    %176 = vmatprep.subr.bf16.mxu0 %v151
    %177 = vmatpush1.bf16.msra.mxu0 %v150
    %178 = vmatprep.subr.bf16.mxu0 0
    %179 = vmatpush2.bf16.msra.mxu0 0
    %180 = vmatprep.subr.bf16.mxu0 0
    %181 = vmatpush2.bf16.msra.mxu0 0
    %182 = vmatprep.subr.bf16.mxu0 0
    %183 = vmatpush2.bf16.msra.mxu0 0
    %184 = vmatprep.subr.bf16.mxu0 0
    %185 = vmatpush2.bf16.msra.mxu0 0
    %186 = vmatprep.subr.bf16.mxu0 0
    %187 = vmatpush2.bf16.msra.mxu0 0
    %188 = vmatprep.subr.bf16.mxu0 0
    %189 = vmatpush2.bf16.msra.mxu0 0
    %190 = vmatprep.subr.bf16.mxu0 0
    %191 = vmatpush2.bf16.msra.mxu0 0
    %192 = vmatprep.subr.bf16.mxu0 0
    %193 = vmatpush2.bf16.msra.mxu0 0
    %194 = vmatprep.mubr.bf16.mxu0 0
    %195 = vmatmul.mubr.bf16.gmra.mxu0 %v160
    %v196 = vpop.f32.mrf.mxu0
    %v197 = vadd.f32 0.0, %v196
    %v198 = vpop.f32.mrf.mxu0
    %v199 = vadd.f32 0.0, %v198
    %v200 = vpop.f32.mrf.mxu0
    %v201 = vpop.f32.mrf.mxu0
    %202 = vdwg.mxu0
    %v203 = vld [vmem:[#allocation7] sm:$0x3]
    %v204 = vld [vmem:[#allocation8] sm:$0x3]
    %v205 = vrot.slane %v197, 4
    %v206 = vadd.f32 %v197, %v205
    %v207 = vrot.slane %v206, 2
    %v208 = vadd.f32 %v206, %v207
    %v209 = vrot.slane %v208, 1
    %v210 = vadd.f32 %v208, %v209
    %v211 = vrot.slane %v199, 4
    %v212 = vadd.f32 %v199, %v211
    %v213 = vrot.slane %v212, 2
    %v214 = vadd.f32 %v212, %v213
    %v215 = vrot.slane %v214, 1
    %v216 = vadd.f32 %v214, %v215
    %v217 = vmul.f32 %v210, 0.125
    %v218 = vmul.f32 %v216, 0.125
    %v219 = vmul.f32 %v197, %v197
    %v220 = vmul.f32 %v199, %v199
    %v221 = vrot.slane %v219, 4
    %v222 = vadd.f32 %v219, %v221
    %v223 = vrot.slane %v222, 2
    %v224 = vadd.f32 %v222, %v223
    %v225 = vrot.slane %v224, 1
    %v226 = vadd.f32 %v224, %v225
    %v227 = vrot.slane %v220, 4
    %v228 = vadd.f32 %v220, %v227
    %v229 = vrot.slane %v228, 2
    %v230 = vadd.f32 %v228, %v229
    %v231 = vrot.slane %v230, 1
    %v232 = vadd.f32 %v230, %v231
    %v233 = vmul.f32 %v226, 0.125
    %v234 = vmul.f32 %v232, 0.125
    %v235 = vmul.f32 %v217, %v217
    %v236 = vmul.f32 %v218, %v218
    %v237 = vsub.f32 %v233, %v235
    %v238 = vsub.f32 %v234, %v236
    %v239 = vmax.f32 %v237, 0.0
    %v240 = vmax.f32 %v238, 0.0
    %v241 = vadd.f32 %v239, 1e-05
    %v242 = vadd.f32 %v240, 1e-05
    %v243 = vrsqrt.pop %v241
    %v244 = vrsqrt.pop %v242
    %v246 = vlaneseq
    %v247 = vshrl.u32 %v246, 7
    %v248 = vsub.s32 0, %v247
    %v249 = vrot.slane %v203, %v248
    %v250 = vlaneseq
    %v251 = vshrl.u32 %v250, 7
    %v252 = vsub.s32 1, %v251
    %v253 = vrot.slane %v203, %v252
    %v256 = vmul.f32 %v243, %v249
    %v257 = vmul.f32 %v244, %v253
    %v258 = vmul.f32 %v217, %v256
    %v259 = vmul.f32 %v218, %v257
    %v262 = vcombine.low %v258, %v259
    %v264 = vunpack.c.l.s4 1966171168
    %v265 = vunpack.c.0.s8 %v264
    %v266 = vlaneseq
    %v267 = vshrl.u32 %v266, 7
    %v268 = vsub.s32 %v265, %v267
    %v269 = vrot.slane %v262, %v268
    %v271 = vunpack.c.l.s4 1966171168
    %v272 = vunpack.c.0.s8 %v271
    %v273 = vlaneseq
    %v274 = vshrl.u32 %v273, 7
    %v275 = vsub.s32 %v272, %v274
    %v276 = vrot.slane %v269, %v275
    %v278 = vsub.f32 %v204, %v276
    %v279 = vlaneseq
    %v280 = vshrl.u32 %v279, 7
    %v281 = vsub.s32 0, %v280
    %v282 = vrot.slane %v256, %v281
    %v283 = vlaneseq
    %v284 = vshrl.u32 %v283, 7
    %v285 = vsub.s32 0, %v284
    %v286 = vrot.slane %v257, %v285
    %v287 = vmul.f32 %v197, %v282
    %v288 = vmul.f32 %v199, %v286
    %v290 = vlaneseq
    %v291 = vshrl.u32 %v290, 7
    %v292 = vsub.s32 0, %v291
    %v293 = vrot.slane %v278, %v292
    %v294 = vlaneseq
    %v295 = vshrl.u32 %v294, 7
    %v296 = vsub.s32 1, %v295
    %v297 = vrot.slane %v278, %v296
    %v300 = vadd.f32 %v287, %v293
    %v301 = vadd.f32 %v288, %v297
    %v302 = vmax.f32 %v300, 0.0
    %v303 = vmax.f32 %v301, 0.0
    %v304 = vpack.c.bf16 %v302, %v302
    %v305 = vpack.c.bf16 %v303, %v303
    %v306 = vld [vmem:[#allocation10] sm:$0xff]
    %v307 = vld [vmem:[#allocation10 + $0x8] sm:$0xff]
    %v308 = vld [vmem:[#allocation10 + $0x10] sm:$0xff]
    %v309 = vld [vmem:[#allocation10 + $0x18] sm:$0xff]
    %v310 = vld [vmem:[#allocation10 + $0x20] sm:$0xff]
    %v311 = vld [vmem:[#allocation10 + $0x28] sm:$0xff]
    %v312 = vld [vmem:[#allocation10 + $0x30] sm:$0xff]
    %v313 = vld [vmem:[#allocation10 + $0x38] sm:$0xff]
    %v314 = vld [vmem:[#allocation10 + $0x40] sm:$0xff]
    %v315 = vld [vmem:[#allocation10 + $0x48] sm:$0xff]
    %v316 = vld [vmem:[#allocation10 + $0x50] sm:$0xff]
    %v317 = vld [vmem:[#allocation10 + $0x58] sm:$0xff]
    %v318 = vld [vmem:[#allocation10 + $0x60] sm:$0xff]
    %v319 = vld [vmem:[#allocation10 + $0x68] sm:$0xff]
    %v320 = vld [vmem:[#allocation10 + $0x70] sm:$0xff]
    %v321 = vld [vmem:[#allocation10 + $0x78] sm:$0xff]
    %v322 = vld [vmem:[#allocation10 + $0x80] sm:$0xff]
    %v323 = vld [vmem:[#allocation10 + $0x88] sm:$0xff]
    %v324 = vld [vmem:[#allocation10 + $0x90] sm:$0xff]
    %v325 = vld [vmem:[#allocation10 + $0x98] sm:$0xff]
    %v326 = vld [vmem:[#allocation10 + $0xa0] sm:$0xff]
    %v327 = vld [vmem:[#allocation10 + $0xa8] sm:$0xff]
    %v328 = vld [vmem:[#allocation10 + $0xb0] sm:$0xff]
    %v329 = vld [vmem:[#allocation10 + $0xb8] sm:$0xff]
    %v330 = vld [vmem:[#allocation10 + $0xc0] sm:$0xff]
    %v331 = vld [vmem:[#allocation10 + $0xc8] sm:$0xff]
    %v332 = vld [vmem:[#allocation10 + $0xd0] sm:$0xff]
    %v333 = vld [vmem:[#allocation10 + $0xd8] sm:$0xff]
    %v334 = vld [vmem:[#allocation10 + $0xe0] sm:$0xff]
    %v335 = vld [vmem:[#allocation10 + $0xe8] sm:$0xff]
    %v336 = vld [vmem:[#allocation10 + $0xf0] sm:$0xff]
    %v337 = vld [vmem:[#allocation10 + $0xf8] sm:$0xff]
    %v338 = vld [vmem:[#allocation10 + $0x100] sm:$0xff]
    %v339 = vld [vmem:[#allocation10 + $0x108] sm:$0xff]
    %v340 = vld [vmem:[#allocation10 + $0x110] sm:$0xff]
    %v341 = vld [vmem:[#allocation10 + $0x118] sm:$0xff]
    %v342 = vld [vmem:[#allocation10 + $0x120] sm:$0xff]
    %v343 = vld [vmem:[#allocation10 + $0x128] sm:$0xff]
    %v344 = vld [vmem:[#allocation10 + $0x130] sm:$0xff]
    %v345 = vld [vmem:[#allocation10 + $0x138] sm:$0xff]
    %v346 = vld [vmem:[#allocation10 + $0x140] sm:$0xff]
    %v347 = vld [vmem:[#allocation10 + $0x148] sm:$0xff]
    %v348 = vld [vmem:[#allocation10 + $0x150] sm:$0xff]
    %v349 = vld [vmem:[#allocation10 + $0x158] sm:$0xff]
    %v350 = vld [vmem:[#allocation10 + $0x160] sm:$0xff]
    %v351 = vld [vmem:[#allocation10 + $0x168] sm:$0xff]
    %v352 = vld [vmem:[#allocation10 + $0x170] sm:$0xff]
    %v353 = vld [vmem:[#allocation10 + $0x178] sm:$0xff]
    %v354 = vld [vmem:[#allocation10 + $0x180] sm:$0xff]
    %v355 = vld [vmem:[#allocation10 + $0x188] sm:$0xff]
    %v356 = vld [vmem:[#allocation10 + $0x190] sm:$0xff]
    %v357 = vld [vmem:[#allocation10 + $0x198] sm:$0xff]
    %v358 = vld [vmem:[#allocation10 + $0x1a0] sm:$0xff]
    %v359 = vld [vmem:[#allocation10 + $0x1a8] sm:$0xff]
    %v360 = vld [vmem:[#allocation10 + $0x1b0] sm:$0xff]
    %v361 = vld [vmem:[#allocation10 + $0x1b8] sm:$0xff]
    %v362 = vld [vmem:[#allocation10 + $0x1c0] sm:$0xff]
    %v363 = vld [vmem:[#allocation10 + $0x1c8] sm:$0xff]
    %v364 = vld [vmem:[#allocation10 + $0x1d0] sm:$0xff]
    %v365 = vld [vmem:[#allocation10 + $0x1d8] sm:$0xff]
    %v366 = vld [vmem:[#allocation10 + $0x1e0] sm:$0xff]
    %v367 = vld [vmem:[#allocation10 + $0x1e8] sm:$0xff]
    %v368 = vld [vmem:[#allocation10 + $0x1f0] sm:$0xff]
    %v369 = vld [vmem:[#allocation10 + $0x1f8] sm:$0xff]
    %v434 = vunpack.c.l.b16 %v306
    %v435 = vunpack.c.h.b16 %v306
    %v436 = vunpack.c.l.b16 %v307
    %v437 = vunpack.c.h.b16 %v307
    %v438 = vunpack.c.l.b16 %v308
    %v439 = vunpack.c.h.b16 %v308
    %v440 = vunpack.c.l.b16 %v309
    %v441 = vunpack.c.h.b16 %v309
    %v442 = vunpack.c.l.b16 %v310
    %v443 = vunpack.c.h.b16 %v310
    %v444 = vunpack.c.l.b16 %v311
    %v445 = vunpack.c.h.b16 %v311
    %v446 = vunpack.c.l.b16 %v312
    %v447 = vunpack.c.h.b16 %v312
    %v448 = vunpack.c.l.b16 %v313
    %v449 = vunpack.c.h.b16 %v313
    %v450 = vunpack.c.l.b16 %v314
    %v451 = vunpack.c.h.b16 %v314
    %v452 = vunpack.c.l.b16 %v315
    %v453 = vunpack.c.h.b16 %v315
    %v454 = vunpack.c.l.b16 %v316
    %v455 = vunpack.c.h.b16 %v316
    %v456 = vunpack.c.l.b16 %v317
    %v457 = vunpack.c.h.b16 %v317
    %v458 = vunpack.c.l.b16 %v318
    %v459 = vunpack.c.h.b16 %v318
    %v460 = vunpack.c.l.b16 %v319
    %v461 = vunpack.c.h.b16 %v319
    %v462 = vunpack.c.l.b16 %v320
    %v463 = vunpack.c.h.b16 %v320
    %v464 = vunpack.c.l.b16 %v321
    %v465 = vunpack.c.h.b16 %v321
    %v466 = vunpack.c.l.b16 %v322
    %v467 = vunpack.c.h.b16 %v322
    %v468 = vunpack.c.l.b16 %v323
    %v469 = vunpack.c.h.b16 %v323
    %v470 = vunpack.c.l.b16 %v324
    %v471 = vunpack.c.h.b16 %v324
    %v472 = vunpack.c.l.b16 %v325
    %v473 = vunpack.c.h.b16 %v325
    %v474 = vunpack.c.l.b16 %v326
    %v475 = vunpack.c.h.b16 %v326
    %v476 = vunpack.c.l.b16 %v327
    %v477 = vunpack.c.h.b16 %v327
    %v478 = vunpack.c.l.b16 %v328
    %v479 = vunpack.c.h.b16 %v328
    %v480 = vunpack.c.l.b16 %v329
    %v481 = vunpack.c.h.b16 %v329
    %v482 = vunpack.c.l.b16 %v330
    %v483 = vunpack.c.h.b16 %v330
    %v484 = vunpack.c.l.b16 %v331
    %v485 = vunpack.c.h.b16 %v331
    %v486 = vunpack.c.l.b16 %v332
    %v487 = vunpack.c.h.b16 %v332
    %v488 = vunpack.c.l.b16 %v333
    %v489 = vunpack.c.h.b16 %v333
    %v490 = vunpack.c.l.b16 %v334
    %v491 = vunpack.c.h.b16 %v334
    %v492 = vunpack.c.l.b16 %v335
    %v493 = vunpack.c.h.b16 %v335
    %v494 = vunpack.c.l.b16 %v336
    %v495 = vunpack.c.h.b16 %v336
    %v496 = vunpack.c.l.b16 %v337
    %v497 = vunpack.c.h.b16 %v337
    %v498 = vunpack.c.l.b16 %v338
    %v499 = vunpack.c.h.b16 %v338
    %v500 = vunpack.c.l.b16 %v339
    %v501 = vunpack.c.h.b16 %v339
    %v502 = vunpack.c.l.b16 %v340
    %v503 = vunpack.c.h.b16 %v340
    %v504 = vunpack.c.l.b16 %v341
    %v505 = vunpack.c.h.b16 %v341
    %v506 = vunpack.c.l.b16 %v342
    %v507 = vunpack.c.h.b16 %v342
    %v508 = vunpack.c.l.b16 %v343
    %v509 = vunpack.c.h.b16 %v343
    %v510 = vunpack.c.l.b16 %v344
    %v511 = vunpack.c.h.b16 %v344
    %v512 = vunpack.c.l.b16 %v345
    %v513 = vunpack.c.h.b16 %v345
    %v514 = vunpack.c.l.b16 %v346
    %v515 = vunpack.c.h.b16 %v346
    %v516 = vunpack.c.l.b16 %v347
    %v517 = vunpack.c.h.b16 %v347
    %v518 = vunpack.c.l.b16 %v348
    %v519 = vunpack.c.h.b16 %v348
    %v520 = vunpack.c.l.b16 %v349
    %v521 = vunpack.c.h.b16 %v349
    %v522 = vunpack.c.l.b16 %v350
    %v523 = vunpack.c.h.b16 %v350
    %v524 = vunpack.c.l.b16 %v351
    %v525 = vunpack.c.h.b16 %v351
    %v526 = vunpack.c.l.b16 %v352
    %v527 = vunpack.c.h.b16 %v352
    %v528 = vunpack.c.l.b16 %v353
    %v529 = vunpack.c.h.b16 %v353
    %v530 = vunpack.c.l.b16 %v354
    %v531 = vunpack.c.h.b16 %v354
    %v532 = vunpack.c.l.b16 %v355
    %v533 = vunpack.c.h.b16 %v355
    %v534 = vunpack.c.l.b16 %v356
    %v535 = vunpack.c.h.b16 %v356
    %v536 = vunpack.c.l.b16 %v357
    %v537 = vunpack.c.h.b16 %v357
    %v538 = vunpack.c.l.b16 %v358
    %v539 = vunpack.c.h.b16 %v358
    %v540 = vunpack.c.l.b16 %v359
    %v541 = vunpack.c.h.b16 %v359
    %v542 = vunpack.c.l.b16 %v360
    %v543 = vunpack.c.h.b16 %v360
    %v544 = vunpack.c.l.b16 %v361
    %v545 = vunpack.c.h.b16 %v361
    %v546 = vunpack.c.l.b16 %v362
    %v547 = vunpack.c.h.b16 %v362
    %v548 = vunpack.c.l.b16 %v363
    %v549 = vunpack.c.h.b16 %v363
    %v550 = vunpack.c.l.b16 %v364
    %v551 = vunpack.c.h.b16 %v364
    %v552 = vunpack.c.l.b16 %v365
    %v553 = vunpack.c.h.b16 %v365
    %v554 = vunpack.c.l.b16 %v366
    %v555 = vunpack.c.h.b16 %v366
    %v556 = vunpack.c.l.b16 %v367
    %v557 = vunpack.c.h.b16 %v367
    %v558 = vunpack.c.l.b16 %v368
    %v559 = vunpack.c.h.b16 %v368
    %v560 = vunpack.c.l.b16 %v369
    %v561 = vunpack.c.h.b16 %v369
    %v562 = vpack.c.b16 %v438, %v434
    %v563 = vpack.c.b16 %v439, %v435
    %v564 = vpack.c.b16 %v440, %v436
    %v565 = vpack.c.b16 %v441, %v437
    %v566 = vpack.c.b16 %v446, %v442
    %v567 = vpack.c.b16 %v447, %v443
    %v568 = vpack.c.b16 %v448, %v444
    %v569 = vpack.c.b16 %v449, %v445
    %v570 = vpack.c.b16 %v454, %v450
    %v571 = vpack.c.b16 %v455, %v451
    %v572 = vpack.c.b16 %v456, %v452
    %v573 = vpack.c.b16 %v457, %v453
    %v574 = vpack.c.b16 %v462, %v458
    %v575 = vpack.c.b16 %v463, %v459
    %v576 = vpack.c.b16 %v464, %v460
    %v577 = vpack.c.b16 %v465, %v461
    %v578 = vpack.c.b16 %v470, %v466
    %v579 = vpack.c.b16 %v471, %v467
    %v580 = vpack.c.b16 %v472, %v468
    %v581 = vpack.c.b16 %v473, %v469
    %v582 = vpack.c.b16 %v478, %v474
    %v583 = vpack.c.b16 %v479, %v475
    %v584 = vpack.c.b16 %v480, %v476
    %v585 = vpack.c.b16 %v481, %v477
    %v586 = vpack.c.b16 %v486, %v482
    %v587 = vpack.c.b16 %v487, %v483
    %v588 = vpack.c.b16 %v488, %v484
    %v589 = vpack.c.b16 %v489, %v485
    %v590 = vpack.c.b16 %v494, %v490
    %v591 = vpack.c.b16 %v495, %v491
    %v592 = vpack.c.b16 %v496, %v492
    %v593 = vpack.c.b16 %v497, %v493
    %v594 = vpack.c.b16 %v502, %v498
    %v595 = vpack.c.b16 %v503, %v499
    %v596 = vpack.c.b16 %v504, %v500
    %v597 = vpack.c.b16 %v505, %v501
    %v598 = vpack.c.b16 %v510, %v506
    %v599 = vpack.c.b16 %v511, %v507
    %v600 = vpack.c.b16 %v512, %v508
    %v601 = vpack.c.b16 %v513, %v509
    %v602 = vpack.c.b16 %v518, %v514
    %v603 = vpack.c.b16 %v519, %v515
    %v604 = vpack.c.b16 %v520, %v516
    %v605 = vpack.c.b16 %v521, %v517
    %v606 = vpack.c.b16 %v526, %v522
    %v607 = vpack.c.b16 %v527, %v523
    %v608 = vpack.c.b16 %v528, %v524
    %v609 = vpack.c.b16 %v529, %v525
    %v610 = vpack.c.b16 %v534, %v530
    %v611 = vpack.c.b16 %v535, %v531
    %v612 = vpack.c.b16 %v536, %v532
    %v613 = vpack.c.b16 %v537, %v533
    %v614 = vpack.c.b16 %v542, %v538
    %v615 = vpack.c.b16 %v543, %v539
    %v616 = vpack.c.b16 %v544, %v540
    %v617 = vpack.c.b16 %v545, %v541
    %v618 = vpack.c.b16 %v550, %v546
    %v619 = vpack.c.b16 %v551, %v547
    %v620 = vpack.c.b16 %v552, %v548
    %v621 = vpack.c.b16 %v553, %v549
    %v622 = vpack.c.b16 %v558, %v554
    %v623 = vpack.c.b16 %v559, %v555
    %v624 = vpack.c.b16 %v560, %v556
    %v625 = vpack.c.b16 %v561, %v557
    %690 = vmatprep.subr.bf16.mxu0 %v591
    %691 = vmatpush1.bf16.msra.mxu0 %v590
    %692 = vmatprep.subr.bf16.mxu0 %v587
    %693 = vmatpush1.bf16.msra.mxu0 %v586
    %694 = vmatprep.subr.bf16.mxu0 %v583
    %695 = vmatpush1.bf16.msra.mxu0 %v582
    %696 = vmatprep.subr.bf16.mxu0 %v579
    %697 = vmatpush1.bf16.msra.mxu0 %v578
    %698 = vmatprep.subr.bf16.mxu0 %v575
    %699 = vmatpush1.bf16.msra.mxu0 %v574
    %700 = vmatprep.subr.bf16.mxu0 %v571
    %701 = vmatpush1.bf16.msra.mxu0 %v570
    %702 = vmatprep.subr.bf16.mxu0 %v567
    %703 = vmatpush1.bf16.msra.mxu0 %v566
    %704 = vmatprep.subr.bf16.mxu0 %v563
    %705 = vmatpush1.bf16.msra.mxu0 %v562
    %706 = vmatprep.subr.bf16.mxu0 %v623
    %707 = vmatpush2.bf16.msra.mxu0 %v622
    %708 = vmatprep.subr.bf16.mxu0 %v619
    %709 = vmatpush2.bf16.msra.mxu0 %v618
    %710 = vmatprep.subr.bf16.mxu0 %v615
    %711 = vmatpush2.bf16.msra.mxu0 %v614
    %712 = vmatprep.subr.bf16.mxu0 %v611
    %713 = vmatpush2.bf16.msra.mxu0 %v610
    %714 = vmatprep.subr.bf16.mxu0 %v607
    %715 = vmatpush2.bf16.msra.mxu0 %v606
    %716 = vmatprep.subr.bf16.mxu0 %v603
    %717 = vmatpush2.bf16.msra.mxu0 %v602
    %718 = vmatprep.subr.bf16.mxu0 %v599
    %719 = vmatpush2.bf16.msra.mxu0 %v598
    %720 = vmatprep.subr.bf16.mxu0 %v595
    %721 = vmatpush2.bf16.msra.mxu0 %v594
    %722 = vmatprep.mubr.bf16.mxu0 %v305
    %723 = vmatmul.mubr.bf16.gmra.mxu0 %v304
    %v724 = vpop.f32.mrf.mxu0
    %v725 = vadd.f32 0.0, %v724
    %v726 = vpop.f32.mrf.mxu0
    %v727 = vadd.f32 0.0, %v726
    %v728 = vpop.f32.mrf.mxu0
    %v729 = vpop.f32.mrf.mxu0
    %730 = vdwg.mxu0
    %731 = vmatprep.subr.bf16.mxu0 %v593
    %732 = vmatpush1.bf16.msra.mxu0 %v592
    %733 = vmatprep.subr.bf16.mxu0 %v589
    %734 = vmatpush1.bf16.msra.mxu0 %v588
    %735 = vmatprep.subr.bf16.mxu0 %v585
    %736 = vmatpush1.bf16.msra.mxu0 %v584
    %737 = vmatprep.subr.bf16.mxu0 %v581
    %738 = vmatpush1.bf16.msra.mxu0 %v580
    %739 = vmatprep.subr.bf16.mxu0 %v577
    %740 = vmatpush1.bf16.msra.mxu0 %v576
    %741 = vmatprep.subr.bf16.mxu0 %v573
    %742 = vmatpush1.bf16.msra.mxu0 %v572
    %743 = vmatprep.subr.bf16.mxu0 %v569
    %744 = vmatpush1.bf16.msra.mxu0 %v568
    %745 = vmatprep.subr.bf16.mxu0 %v565
    %746 = vmatpush1.bf16.msra.mxu0 %v564
    %747 = vmatprep.subr.bf16.mxu0 %v625
    %748 = vmatpush2.bf16.msra.mxu0 %v624
    %749 = vmatprep.subr.bf16.mxu0 %v621
    %750 = vmatpush2.bf16.msra.mxu0 %v620
    %751 = vmatprep.subr.bf16.mxu0 %v617
    %752 = vmatpush2.bf16.msra.mxu0 %v616
    %753 = vmatprep.subr.bf16.mxu0 %v613
    %754 = vmatpush2.bf16.msra.mxu0 %v612
    %755 = vmatprep.subr.bf16.mxu0 %v609
    %756 = vmatpush2.bf16.msra.mxu0 %v608
    %757 = vmatprep.subr.bf16.mxu0 %v605
    %758 = vmatpush2.bf16.msra.mxu0 %v604
    %759 = vmatprep.subr.bf16.mxu0 %v601
    %760 = vmatpush2.bf16.msra.mxu0 %v600
    %761 = vmatprep.subr.bf16.mxu0 %v597
    %762 = vmatpush2.bf16.msra.mxu0 %v596
    %763 = vmatprep.mubr.bf16.mxu0 %v305
    %764 = vmatmul.mubr.bf16.gmra.mxu0 %v304
    %v765 = vpop.f32.mrf.mxu0
    %v766 = vadd.f32 0.0, %v765
    %v767 = vpop.f32.mrf.mxu0
    %v768 = vadd.f32 0.0, %v767
    %v769 = vpop.f32.mrf.mxu0
    %v770 = vpop.f32.mrf.mxu0
    %771 = vdwg.mxu0
    %v772 = vld [vmem:[%s5] sm:$0xf]
    %v773 = vld [vmem:[%s6] sm:$0xf]
    %v774 = vrot.slane %v725, 4
    %v775 = vadd.f32 %v725, %v774
    %v776 = vrot.slane %v775, 2
    %v777 = vadd.f32 %v775, %v776
    %v778 = vrot.slane %v777, 1
    %v779 = vadd.f32 %v777, %v778
    %v780 = vrot.slane %v727, 4
    %v781 = vadd.f32 %v727, %v780
    %v782 = vrot.slane %v781, 2
    %v783 = vadd.f32 %v781, %v782
    %v784 = vrot.slane %v783, 1
    %v785 = vadd.f32 %v783, %v784
    %v786 = vrot.slane %v766, 4
    %v787 = vadd.f32 %v766, %v786
    %v788 = vrot.slane %v787, 2
    %v789 = vadd.f32 %v787, %v788
    %v790 = vrot.slane %v789, 1
    %v791 = vadd.f32 %v789, %v790
    %v792 = vrot.slane %v768, 4
    %v793 = vadd.f32 %v768, %v792
    %v794 = vrot.slane %v793, 2
    %v795 = vadd.f32 %v793, %v794
    %v796 = vrot.slane %v795, 1
    %v797 = vadd.f32 %v795, %v796
    %v798 = vmul.f32 %v779, 0.125
    %v799 = vmul.f32 %v785, 0.125
    %v800 = vmul.f32 %v791, 0.125
    %v801 = vmul.f32 %v797, 0.125
    %v802 = vmul.f32 %v725, %v725
    %v803 = vmul.f32 %v727, %v727
    %v804 = vmul.f32 %v766, %v766
    %v805 = vmul.f32 %v768, %v768
    %v806 = vrot.slane %v802, 4
    %v807 = vadd.f32 %v802, %v806
    %v808 = vrot.slane %v807, 2
    %v809 = vadd.f32 %v807, %v808
    %v810 = vrot.slane %v809, 1
    %v811 = vadd.f32 %v809, %v810
    %v812 = vrot.slane %v803, 4
    %v813 = vadd.f32 %v803, %v812
    %v814 = vrot.slane %v813, 2
    %v815 = vadd.f32 %v813, %v814
    %v816 = vrot.slane %v815, 1
    %v817 = vadd.f32 %v815, %v816
    %v818 = vrot.slane %v804, 4
    %v819 = vadd.f32 %v804, %v818
    %v820 = vrot.slane %v819, 2
    %v821 = vadd.f32 %v819, %v820
    %v822 = vrot.slane %v821, 1
    %v823 = vadd.f32 %v821, %v822
    %v824 = vrot.slane %v805, 4
    %v825 = vadd.f32 %v805, %v824
    %v826 = vrot.slane %v825, 2
    %v827 = vadd.f32 %v825, %v826
    %v828 = vrot.slane %v827, 1
    %v829 = vadd.f32 %v827, %v828
    %v830 = vmul.f32 %v811, 0.125
    %v831 = vmul.f32 %v817, 0.125
    %v832 = vmul.f32 %v823, 0.125
    %v833 = vmul.f32 %v829, 0.125
    %v834 = vmul.f32 %v798, %v798
    %v835 = vmul.f32 %v799, %v799
    %v836 = vmul.f32 %v800, %v800
    %v837 = vmul.f32 %v801, %v801
    %v838 = vsub.f32 %v830, %v834
    %v839 = vsub.f32 %v831, %v835
    %v840 = vsub.f32 %v832, %v836
    %v841 = vsub.f32 %v833, %v837
    %v842 = vmax.f32 %v838, 0.0
    %v843 = vmax.f32 %v839, 0.0
    %v844 = vmax.f32 %v840, 0.0
    %v845 = vmax.f32 %v841, 0.0
    %v846 = vadd.f32 %v842, 1e-05
    %v847 = vadd.f32 %v843, 1e-05
    %v848 = vadd.f32 %v844, 1e-05
    %v849 = vadd.f32 %v845, 1e-05
    %v850 = vrsqrt.pop %v846
    %v851 = vrsqrt.pop %v847
    %v852 = vrsqrt.pop %v848
    %v853 = vrsqrt.pop %v849
    %v855 = vlaneseq
    %v856 = vshrl.u32 %v855, 7
    %v857 = vsub.s32 0, %v856
    %v858 = vrot.slane %v772, %v857
    %v859 = vlaneseq
    %v860 = vshrl.u32 %v859, 7
    %v861 = vsub.s32 1, %v860
    %v862 = vrot.slane %v772, %v861
    %v863 = vlaneseq
    %v864 = vshrl.u32 %v863, 7
    %v865 = vsub.s32 2, %v864
    %v866 = vrot.slane %v772, %v865
    %v867 = vlaneseq
    %v868 = vshrl.u32 %v867, 7
    %v869 = vsub.s32 3, %v868
    %v870 = vrot.slane %v772, %v869
    %v875 = vmul.f32 %v850, %v858
    %v876 = vmul.f32 %v851, %v862
    %v877 = vmul.f32 %v852, %v866
    %v878 = vmul.f32 %v853, %v870
    %v879 = vmul.f32 %v798, %v875
    %v880 = vmul.f32 %v799, %v876
    %v881 = vmul.f32 %v800, %v877
    %v882 = vmul.f32 %v801, %v878
    %v887 = vcombine.low %v879, %v880
    %v888 = vcombine.low %v881, %v882
    %v890 = vunpack.c.l.s4 1966171168
    %v891 = vunpack.c.0.s8 %v890
    %v892 = vlaneseq
    %v893 = vshrl.u32 %v892, 7
    %v894 = vsub.s32 %v891, %v893
    %v895 = vrot.slane %v887, %v894
    %v897 = vunpack.c.l.s4 1966171168
    %v898 = vunpack.c.0.s8 %v897
    %v899 = vlaneseq
    %v900 = vshrl.u32 %v899, 7
    %v901 = vsub.s32 %v898, %v900
    %v902 = vrot.slane %v888, %v901
    %v903 = vcombine.low %v895, %v902
    %v905 = vunpack.c.l.s4 1966171168
    %v906 = vunpack.c.0.s8 %v905
    %v907 = vlaneseq
    %v908 = vshrl.u32 %v907, 7
    %v909 = vsub.s32 %v906, %v908
    %v910 = vrot.slane %v903, %v909
    %v912 = vsub.f32 %v773, %v910
    %v913 = vlaneseq
    %v914 = vshrl.u32 %v913, 7
    %v915 = vsub.s32 0, %v914
    %v916 = vrot.slane %v875, %v915
    %v917 = vlaneseq
    %v918 = vshrl.u32 %v917, 7
    %v919 = vsub.s32 0, %v918
    %v920 = vrot.slane %v876, %v919
    %v921 = vlaneseq
    %v922 = vshrl.u32 %v921, 7
    %v923 = vsub.s32 0, %v922
    %v924 = vrot.slane %v877, %v923
    %v925 = vlaneseq
    %v926 = vshrl.u32 %v925, 7
    %v927 = vsub.s32 0, %v926
    %v928 = vrot.slane %v878, %v927
    %v929 = vmul.f32 %v725, %v916
    %v930 = vmul.f32 %v727, %v920
    %v931 = vmul.f32 %v766, %v924
    %v932 = vmul.f32 %v768, %v928
    %v934 = vlaneseq
    %v935 = vshrl.u32 %v934, 7
    %v936 = vsub.s32 0, %v935
    %v937 = vrot.slane %v912, %v936
    %v938 = vlaneseq
    %v939 = vshrl.u32 %v938, 7
    %v940 = vsub.s32 1, %v939
    %v941 = vrot.slane %v912, %v940
    %v942 = vlaneseq
    %v943 = vshrl.u32 %v942, 7
    %v944 = vsub.s32 2, %v943
    %v945 = vrot.slane %v912, %v944
    %v946 = vlaneseq
    %v947 = vshrl.u32 %v946, 7
    %v948 = vsub.s32 3, %v947
    %v949 = vrot.slane %v912, %v948
    %v954 = vadd.f32 %v929, %v937
    %v955 = vadd.f32 %v930, %v941
    %v956 = vadd.f32 %v931, %v945
    %v957 = vadd.f32 %v932, %v949
    %v958 = vmax.f32 %v954, 0.0
    %v959 = vmax.f32 %v955, 0.0
    %v960 = vmax.f32 %v956, 0.0
    %v961 = vmax.f32 %v957, 0.0
    %v962 = vpack.c.bf16 %v958, %v958
    %v963 = vpack.c.bf16 %v959, %v959
    %v964 = vpack.c.bf16 %v960, %v960
    %v965 = vpack.c.bf16 %v961, %v961
    %v966 = vld [vmem:[#allocation11] sm:$0xff]
    %v967 = vld [vmem:[#allocation11 + $0x8] sm:$0xff]
    %v968 = vld [vmem:[#allocation11 + $0x10] sm:$0xff]
    %v969 = vld [vmem:[#allocation11 + $0x18] sm:$0xff]
    %v970 = vld [vmem:[#allocation11 + $0x20] sm:$0xff]
    %v971 = vld [vmem:[#allocation11 + $0x28] sm:$0xff]
    %v972 = vld [vmem:[#allocation11 + $0x30] sm:$0xff]
    %v973 = vld [vmem:[#allocation11 + $0x38] sm:$0xff]
    %v974 = vld [vmem:[#allocation11 + $0x40] sm:$0xff]
    %v975 = vld [vmem:[#allocation11 + $0x48] sm:$0xff]
    %v976 = vld [vmem:[#allocation11 + $0x50] sm:$0xff]
    %v977 = vld [vmem:[#allocation11 + $0x58] sm:$0xff]
    %v978 = vld [vmem:[#allocation11 + $0x60] sm:$0xff]
    %v979 = vld [vmem:[#allocation11 + $0x68] sm:$0xff]
    %v980 = vld [vmem:[#allocation11 + $0x70] sm:$0xff]
    %v981 = vld [vmem:[#allocation11 + $0x78] sm:$0xff]
    %v982 = vld [vmem:[#allocation11 + $0x80] sm:$0xff]
    %v983 = vld [vmem:[#allocation11 + $0x88] sm:$0xff]
    %v984 = vld [vmem:[#allocation11 + $0x90] sm:$0xff]
    %v985 = vld [vmem:[#allocation11 + $0x98] sm:$0xff]
    %v986 = vld [vmem:[#allocation11 + $0xa0] sm:$0xff]
    %v987 = vld [vmem:[#allocation11 + $0xa8] sm:$0xff]
    %v988 = vld [vmem:[#allocation11 + $0xb0] sm:$0xff]
    %v989 = vld [vmem:[#allocation11 + $0xb8] sm:$0xff]
    %v990 = vld [vmem:[#allocation11 + $0xc0] sm:$0xff]
    %v991 = vld [vmem:[#allocation11 + $0xc8] sm:$0xff]
    %v992 = vld [vmem:[#allocation11 + $0xd0] sm:$0xff]
    %v993 = vld [vmem:[#allocation11 + $0xd8] sm:$0xff]
    %v994 = vld [vmem:[#allocation11 + $0xe0] sm:$0xff]
    %v995 = vld [vmem:[#allocation11 + $0xe8] sm:$0xff]
    %v996 = vld [vmem:[#allocation11 + $0xf0] sm:$0xff]
    %v997 = vld [vmem:[#allocation11 + $0xf8] sm:$0xff]
    %v998 = vld [vmem:[#allocation11 + $0x100] sm:$0xff]
    %v999 = vld [vmem:[#allocation11 + $0x108] sm:$0xff]
    %v1000 = vld [vmem:[#allocation11 + $0x110] sm:$0xff]
    %v1001 = vld [vmem:[#allocation11 + $0x118] sm:$0xff]
    %v1002 = vld [vmem:[#allocation11 + $0x120] sm:$0xff]
    %v1003 = vld [vmem:[#allocation11 + $0x128] sm:$0xff]
    %v1004 = vld [vmem:[#allocation11 + $0x130] sm:$0xff]
    %v1005 = vld [vmem:[#allocation11 + $0x138] sm:$0xff]
    %v1006 = vld [vmem:[#allocation11 + $0x140] sm:$0xff]
    %v1007 = vld [vmem:[#allocation11 + $0x148] sm:$0xff]
    %v1008 = vld [vmem:[#allocation11 + $0x150] sm:$0xff]
    %v1009 = vld [vmem:[#allocation11 + $0x158] sm:$0xff]
    %v1010 = vld [vmem:[#allocation11 + $0x160] sm:$0xff]
    %v1011 = vld [vmem:[#allocation11 + $0x168] sm:$0xff]
    %v1012 = vld [vmem:[#allocation11 + $0x170] sm:$0xff]
    %v1013 = vld [vmem:[#allocation11 + $0x178] sm:$0xff]
    %v1014 = vld [vmem:[#allocation11 + $0x180] sm:$0xff]
    %v1015 = vld [vmem:[#allocation11 + $0x188] sm:$0xff]
    %v1016 = vld [vmem:[#allocation11 + $0x190] sm:$0xff]
    %v1017 = vld [vmem:[#allocation11 + $0x198] sm:$0xff]
    %v1018 = vld [vmem:[#allocation11 + $0x1a0] sm:$0xff]
    %v1019 = vld [vmem:[#allocation11 + $0x1a8] sm:$0xff]
    %v1020 = vld [vmem:[#allocation11 + $0x1b0] sm:$0xff]
    %v1021 = vld [vmem:[#allocation11 + $0x1b8] sm:$0xff]
    %v1022 = vld [vmem:[#allocation11 + $0x1c0] sm:$0xff]
    %v1023 = vld [vmem:[#allocation11 + $0x1c8] sm:$0xff]
    %v1024 = vld [vmem:[#allocation11 + $0x1d0] sm:$0xff]
    %v1025 = vld [vmem:[#allocation11 + $0x1d8] sm:$0xff]
    %v1026 = vld [vmem:[#allocation11 + $0x1e0] sm:$0xff]
    %v1027 = vld [vmem:[#allocation11 + $0x1e8] sm:$0xff]
    %v1028 = vld [vmem:[#allocation11 + $0x1f0] sm:$0xff]
    %v1029 = vld [vmem:[#allocation11 + $0x1f8] sm:$0xff]
    %v1030 = vld [vmem:[#allocation11 + $0x200] sm:$0xff]
    %v1031 = vld [vmem:[#allocation11 + $0x208] sm:$0xff]
    %v1032 = vld [vmem:[#allocation11 + $0x210] sm:$0xff]
    %v1033 = vld [vmem:[#allocation11 + $0x218] sm:$0xff]
    %v1034 = vld [vmem:[#allocation11 + $0x220] sm:$0xff]
    %v1035 = vld [vmem:[#allocation11 + $0x228] sm:$0xff]
    %v1036 = vld [vmem:[#allocation11 + $0x230] sm:$0xff]
    %v1037 = vld [vmem:[#allocation11 + $0x238] sm:$0xff]
    %v1038 = vld [vmem:[#allocation11 + $0x240] sm:$0xff]
    %v1039 = vld [vmem:[#allocation11 + $0x248] sm:$0xff]
    %v1040 = vld [vmem:[#allocation11 + $0x250] sm:$0xff]
    %v1041 = vld [vmem:[#allocation11 + $0x258] sm:$0xff]
    %v1042 = vld [vmem:[#allocation11 + $0x260] sm:$0xff]
    %v1043 = vld [vmem:[#allocation11 + $0x268] sm:$0xff]
    %v1044 = vld [vmem:[#allocation11 + $0x270] sm:$0xff]
    %v1045 = vld [vmem:[#allocation11 + $0x278] sm:$0xff]
    %v1046 = vld [vmem:[#allocation11 + $0x280] sm:$0xff]
    %v1047 = vld [vmem:[#allocation11 + $0x288] sm:$0xff]
    %v1048 = vld [vmem:[#allocation11 + $0x290] sm:$0xff]
    %v1049 = vld [vmem:[#allocation11 + $0x298] sm:$0xff]
    %v1050 = vld [vmem:[#allocation11 + $0x2a0] sm:$0xff]
    %v1051 = vld [vmem:[#allocation11 + $0x2a8] sm:$0xff]
    %v1052 = vld [vmem:[#allocation11 + $0x2b0] sm:$0xff]
    %v1053 = vld [vmem:[#allocation11 + $0x2b8] sm:$0xff]
    %v1054 = vld [vmem:[#allocation11 + $0x2c0] sm:$0xff]
    %v1055 = vld [vmem:[#allocation11 + $0x2c8] sm:$0xff]
    %v1056 = vld [vmem:[#allocation11 + $0x2d0] sm:$0xff]
    %v1057 = vld [vmem:[#allocation11 + $0x2d8] sm:$0xff]
    %v1058 = vld [vmem:[#allocation11 + $0x2e0] sm:$0xff]
    %v1059 = vld [vmem:[#allocation11 + $0x2e8] sm:$0xff]
    %v1060 = vld [vmem:[#allocation11 + $0x2f0] sm:$0xff]
    %v1061 = vld [vmem:[#allocation11 + $0x2f8] sm:$0xff]
    %v1062 = vld [vmem:[#allocation11 + $0x300] sm:$0xff]
    %v1063 = vld [vmem:[#allocation11 + $0x308] sm:$0xff]
    %v1064 = vld [vmem:[#allocation11 + $0x310] sm:$0xff]
    %v1065 = vld [vmem:[#allocation11 + $0x318] sm:$0xff]
    %v1066 = vld [vmem:[#allocation11 + $0x320] sm:$0xff]
    %v1067 = vld [vmem:[#allocation11 + $0x328] sm:$0xff]
    %v1068 = vld [vmem:[#allocation11 + $0x330] sm:$0xff]
    %v1069 = vld [vmem:[#allocation11 + $0x338] sm:$0xff]
    %v1070 = vld [vmem:[#allocation11 + $0x340] sm:$0xff]
    %v1071 = vld [vmem:[#allocation11 + $0x348] sm:$0xff]
    %v1072 = vld [vmem:[#allocation11 + $0x350] sm:$0xff]
    %v1073 = vld [vmem:[#allocation11 + $0x358] sm:$0xff]
    %v1074 = vld [vmem:[#allocation11 + $0x360] sm:$0xff]
    %v1075 = vld [vmem:[#allocation11 + $0x368] sm:$0xff]
    %v1076 = vld [vmem:[#allocation11 + $0x370] sm:$0xff]
    %v1077 = vld [vmem:[#allocation11 + $0x378] sm:$0xff]
    %v1078 = vld [vmem:[#allocation11 + $0x380] sm:$0xff]
    %v1079 = vld [vmem:[#allocation11 + $0x388] sm:$0xff]
    %v1080 = vld [vmem:[#allocation11 + $0x390] sm:$0xff]
    %v1081 = vld [vmem:[#allocation11 + $0x398] sm:$0xff]
    %v1082 = vld [vmem:[#allocation11 + $0x3a0] sm:$0xff]
    %v1083 = vld [vmem:[#allocation11 + $0x3a8] sm:$0xff]
    %v1084 = vld [vmem:[#allocation11 + $0x3b0] sm:$0xff]
    %v1085 = vld [vmem:[#allocation11 + $0x3b8] sm:$0xff]
    %v1086 = vld [vmem:[#allocation11 + $0x3c0] sm:$0xff]
    %v1087 = vld [vmem:[#allocation11 + $0x3c8] sm:$0xff]
    %v1088 = vld [vmem:[#allocation11 + $0x3d0] sm:$0xff]
    %v1089 = vld [vmem:[#allocation11 + $0x3d8] sm:$0xff]
    %v1090 = vld [vmem:[#allocation11 + $0x3e0] sm:$0xff]
    %v1091 = vld [vmem:[#allocation11 + $0x3e8] sm:$0xff]
    %v1092 = vld [vmem:[#allocation11 + $0x3f0] sm:$0xff]
    %v1093 = vld [vmem:[#allocation11 + $0x3f8] sm:$0xff]
    %v1222 = vunpack.c.l.b16 %v966
    %v1223 = vunpack.c.h.b16 %v966
    %v1224 = vunpack.c.l.b16 %v967
    %v1225 = vunpack.c.h.b16 %v967
    %v1226 = vunpack.c.l.b16 %v968
    %v1227 = vunpack.c.h.b16 %v968
    %v1228 = vunpack.c.l.b16 %v969
    %v1229 = vunpack.c.h.b16 %v969
    %v1230 = vunpack.c.l.b16 %v970
    %v1231 = vunpack.c.h.b16 %v970
    %v1232 = vunpack.c.l.b16 %v971
    %v1233 = vunpack.c.h.b16 %v971
    %v1234 = vunpack.c.l.b16 %v972
    %v1235 = vunpack.c.h.b16 %v972
    %v1236 = vunpack.c.l.b16 %v973
    %v1237 = vunpack.c.h.b16 %v973
    %v1238 = vunpack.c.l.b16 %v974
    %v1239 = vunpack.c.h.b16 %v974
    %v1240 = vunpack.c.l.b16 %v975
    %v1241 = vunpack.c.h.b16 %v975
    %v1242 = vunpack.c.l.b16 %v976
    %v1243 = vunpack.c.h.b16 %v976
    %v1244 = vunpack.c.l.b16 %v977
    %v1245 = vunpack.c.h.b16 %v977
    %v1246 = vunpack.c.l.b16 %v978
    %v1247 = vunpack.c.h.b16 %v978
    %v1248 = vunpack.c.l.b16 %v979
    %v1249 = vunpack.c.h.b16 %v979
    %v1250 = vunpack.c.l.b16 %v980
    %v1251 = vunpack.c.h.b16 %v980
    %v1252 = vunpack.c.l.b16 %v981
    %v1253 = vunpack.c.h.b16 %v981
    %v1254 = vunpack.c.l.b16 %v982
    %v1255 = vunpack.c.h.b16 %v982
    %v1256 = vunpack.c.l.b16 %v983
    %v1257 = vunpack.c.h.b16 %v983
    %v1258 = vunpack.c.l.b16 %v984
    %v1259 = vunpack.c.h.b16 %v984
    %v1260 = vunpack.c.l.b16 %v985
    %v1261 = vunpack.c.h.b16 %v985
    %v1262 = vunpack.c.l.b16 %v986
    %v1263 = vunpack.c.h.b16 %v986
    %v1264 = vunpack.c.l.b16 %v987
    %v1265 = vunpack.c.h.b16 %v987
    %v1266 = vunpack.c.l.b16 %v988
    %v1267 = vunpack.c.h.b16 %v988
    %v1268 = vunpack.c.l.b16 %v989
    %v1269 = vunpack.c.h.b16 %v989
    %v1270 = vunpack.c.l.b16 %v990
    %v1271 = vunpack.c.h.b16 %v990
    %v1272 = vunpack.c.l.b16 %v991
    %v1273 = vunpack.c.h.b16 %v991
    %v1274 = vunpack.c.l.b16 %v992
    %v1275 = vunpack.c.h.b16 %v992
    %v1276 = vunpack.c.l.b16 %v993
    %v1277 = vunpack.c.h.b16 %v993
    %v1278 = vunpack.c.l.b16 %v994
    %v1279 = vunpack.c.h.b16 %v994
    %v1280 = vunpack.c.l.b16 %v995
    %v1281 = vunpack.c.h.b16 %v995
    %v1282 = vunpack.c.l.b16 %v996
    %v1283 = vunpack.c.h.b16 %v996
    %v1284 = vunpack.c.l.b16 %v997
    %v1285 = vunpack.c.h.b16 %v997
    %v1286 = vunpack.c.l.b16 %v998
    %v1287 = vunpack.c.h.b16 %v998
    %v1288 = vunpack.c.l.b16 %v999
    %v1289 = vunpack.c.h.b16 %v999
    %v1290 = vunpack.c.l.b16 %v1000
    %v1291 = vunpack.c.h.b16 %v1000
    %v1292 = vunpack.c.l.b16 %v1001
    %v1293 = vunpack.c.h.b16 %v1001
    %v1294 = vunpack.c.l.b16 %v1002
    %v1295 = vunpack.c.h.b16 %v1002
    %v1296 = vunpack.c.l.b16 %v1003
    %v1297 = vunpack.c.h.b16 %v1003
    %v1298 = vunpack.c.l.b16 %v1004
    %v1299 = vunpack.c.h.b16 %v1004
    %v1300 = vunpack.c.l.b16 %v1005
    %v1301 = vunpack.c.h.b16 %v1005
    %v1302 = vunpack.c.l.b16 %v1006
    %v1303 = vunpack.c.h.b16 %v1006
    %v1304 = vunpack.c.l.b16 %v1007
    %v1305 = vunpack.c.h.b16 %v1007
    %v1306 = vunpack.c.l.b16 %v1008
    %v1307 = vunpack.c.h.b16 %v1008
    %v1308 = vunpack.c.l.b16 %v1009
    %v1309 = vunpack.c.h.b16 %v1009
    %v1310 = vunpack.c.l.b16 %v1010
    %v1311 = vunpack.c.h.b16 %v1010
    %v1312 = vunpack.c.l.b16 %v1011
    %v1313 = vunpack.c.h.b16 %v1011
    %v1314 = vunpack.c.l.b16 %v1012
    %v1315 = vunpack.c.h.b16 %v1012
    %v1316 = vunpack.c.l.b16 %v1013
    %v1317 = vunpack.c.h.b16 %v1013
    %v1318 = vunpack.c.l.b16 %v1014
    %v1319 = vunpack.c.h.b16 %v1014
    %v1320 = vunpack.c.l.b16 %v1015
    %v1321 = vunpack.c.h.b16 %v1015
    %v1322 = vunpack.c.l.b16 %v1016
    %v1323 = vunpack.c.h.b16 %v1016
    %v1324 = vunpack.c.l.b16 %v1017
    %v1325 = vunpack.c.h.b16 %v1017
    %v1326 = vunpack.c.l.b16 %v1018
    %v1327 = vunpack.c.h.b16 %v1018
    %v1328 = vunpack.c.l.b16 %v1019
    %v1329 = vunpack.c.h.b16 %v1019
    %v1330 = vunpack.c.l.b16 %v1020
    %v1331 = vunpack.c.h.b16 %v1020
    %v1332 = vunpack.c.l.b16 %v1021
    %v1333 = vunpack.c.h.b16 %v1021
    %v1334 = vunpack.c.l.b16 %v1022
    %v1335 = vunpack.c.h.b16 %v1022
    %v1336 = vunpack.c.l.b16 %v1023
    %v1337 = vunpack.c.h.b16 %v1023
    %v1338 = vunpack.c.l.b16 %v1024
    %v1339 = vunpack.c.h.b16 %v1024
    %v1340 = vunpack.c.l.b16 %v1025
    %v1341 = vunpack.c.h.b16 %v1025
    %v1342 = vunpack.c.l.b16 %v1026
    %v1343 = vunpack.c.h.b16 %v1026
    %v1344 = vunpack.c.l.b16 %v1027
    %v1345 = vunpack.c.h.b16 %v1027
    %v1346 = vunpack.c.l.b16 %v1028
    %v1347 = vunpack.c.h.b16 %v1028
    %v1348 = vunpack.c.l.b16 %v1029
    %v1349 = vunpack.c.h.b16 %v1029
    %v1350 = vunpack.c.l.b16 %v1030
    %v1351 = vunpack.c.h.b16 %v1030
    %v1352 = vunpack.c.l.b16 %v1031
    %v1353 = vunpack.c.h.b16 %v1031
    %v1354 = vunpack.c.l.b16 %v1032
    %v1355 = vunpack.c.h.b16 %v1032
    %v1356 = vunpack.c.l.b16 %v1033
    %v1357 = vunpack.c.h.b16 %v1033
    %v1358 = vunpack.c.l.b16 %v1034
    %v1359 = vunpack.c.h.b16 %v1034
    %v1360 = vunpack.c.l.b16 %v1035
    %v1361 = vunpack.c.h.b16 %v1035
    %v1362 = vunpack.c.l.b16 %v1036
    %v1363 = vunpack.c.h.b16 %v1036
    %v1364 = vunpack.c.l.b16 %v1037
    %v1365 = vunpack.c.h.b16 %v1037
    %v1366 = vunpack.c.l.b16 %v1038
    %v1367 = vunpack.c.h.b16 %v1038
    %v1368 = vunpack.c.l.b16 %v1039
    %v1369 = vunpack.c.h.b16 %v1039
    %v1370 = vunpack.c.l.b16 %v1040
    %v1371 = vunpack.c.h.b16 %v1040
    %v1372 = vunpack.c.l.b16 %v1041
    %v1373 = vunpack.c.h.b16 %v1041
    %v1374 = vunpack.c.l.b16 %v1042
    %v1375 = vunpack.c.h.b16 %v1042
    %v1376 = vunpack.c.l.b16 %v1043
    %v1377 = vunpack.c.h.b16 %v1043
    %v1378 = vunpack.c.l.b16 %v1044
    %v1379 = vunpack.c.h.b16 %v1044
    %v1380 = vunpack.c.l.b16 %v1045
    %v1381 = vunpack.c.h.b16 %v1045
    %v1382 = vunpack.c.l.b16 %v1046
    %v1383 = vunpack.c.h.b16 %v1046
    %v1384 = vunpack.c.l.b16 %v1047
    %v1385 = vunpack.c.h.b16 %v1047
    %v1386 = vunpack.c.l.b16 %v1048
    %v1387 = vunpack.c.h.b16 %v1048
    %v1388 = vunpack.c.l.b16 %v1049
    %v1389 = vunpack.c.h.b16 %v1049
    %v1390 = vunpack.c.l.b16 %v1050
    %v1391 = vunpack.c.h.b16 %v1050
    %v1392 = vunpack.c.l.b16 %v1051
    %v1393 = vunpack.c.h.b16 %v1051
    %v1394 = vunpack.c.l.b16 %v1052
    %v1395 = vunpack.c.h.b16 %v1052
    %v1396 = vunpack.c.l.b16 %v1053
    %v1397 = vunpack.c.h.b16 %v1053
    %v1398 = vunpack.c.l.b16 %v1054
    %v1399 = vunpack.c.h.b16 %v1054
    %v1400 = vunpack.c.l.b16 %v1055
    %v1401 = vunpack.c.h.b16 %v1055
    %v1402 = vunpack.c.l.b16 %v1056
    %v1403 = vunpack.c.h.b16 %v1056
    %v1404 = vunpack.c.l.b16 %v1057
    %v1405 = vunpack.c.h.b16 %v1057
    %v1406 = vunpack.c.l.b16 %v1058
    %v1407 = vunpack.c.h.b16 %v1058
    %v1408 = vunpack.c.l.b16 %v1059
    %v1409 = vunpack.c.h.b16 %v1059
    %v1410 = vunpack.c.l.b16 %v1060
    %v1411 = vunpack.c.h.b16 %v1060
    %v1412 = vunpack.c.l.b16 %v1061
    %v1413 = vunpack.c.h.b16 %v1061
    %v1414 = vunpack.c.l.b16 %v1062
    %v1415 = vunpack.c.h.b16 %v1062
    %v1416 = vunpack.c.l.b16 %v1063
    %v1417 = vunpack.c.h.b16 %v1063
    %v1418 = vunpack.c.l.b16 %v1064
    %v1419 = vunpack.c.h.b16 %v1064
    %v1420 = vunpack.c.l.b16 %v1065
    %v1421 = vunpack.c.h.b16 %v1065
    %v1422 = vunpack.c.l.b16 %v1066
    %v1423 = vunpack.c.h.b16 %v1066
    %v1424 = vunpack.c.l.b16 %v1067
    %v1425 = vunpack.c.h.b16 %v1067
    %v1426 = vunpack.c.l.b16 %v1068
    %v1427 = vunpack.c.h.b16 %v1068
    %v1428 = vunpack.c.l.b16 %v1069
    %v1429 = vunpack.c.h.b16 %v1069
    %v1430 = vunpack.c.l.b16 %v1070
    %v1431 = vunpack.c.h.b16 %v1070
    %v1432 = vunpack.c.l.b16 %v1071
    %v1433 = vunpack.c.h.b16 %v1071
    %v1434 = vunpack.c.l.b16 %v1072
    %v1435 = vunpack.c.h.b16 %v1072
    %v1436 = vunpack.c.l.b16 %v1073
    %v1437 = vunpack.c.h.b16 %v1073
    %v1438 = vunpack.c.l.b16 %v1074
    %v1439 = vunpack.c.h.b16 %v1074
    %v1440 = vunpack.c.l.b16 %v1075
    %v1441 = vunpack.c.h.b16 %v1075
    %v1442 = vunpack.c.l.b16 %v1076
    %v1443 = vunpack.c.h.b16 %v1076
    %v1444 = vunpack.c.l.b16 %v1077
    %v1445 = vunpack.c.h.b16 %v1077
    %v1446 = vunpack.c.l.b16 %v1078
    %v1447 = vunpack.c.h.b16 %v1078
    %v1448 = vunpack.c.l.b16 %v1079
    %v1449 = vunpack.c.h.b16 %v1079
    %v1450 = vunpack.c.l.b16 %v1080
    %v1451 = vunpack.c.h.b16 %v1080
    %v1452 = vunpack.c.l.b16 %v1081
    %v1453 = vunpack.c.h.b16 %v1081
    %v1454 = vunpack.c.l.b16 %v1082
    %v1455 = vunpack.c.h.b16 %v1082
    %v1456 = vunpack.c.l.b16 %v1083
    %v1457 = vunpack.c.h.b16 %v1083
    %v1458 = vunpack.c.l.b16 %v1084
    %v1459 = vunpack.c.h.b16 %v1084
    %v1460 = vunpack.c.l.b16 %v1085
    %v1461 = vunpack.c.h.b16 %v1085
    %v1462 = vunpack.c.l.b16 %v1086
    %v1463 = vunpack.c.h.b16 %v1086
    %v1464 = vunpack.c.l.b16 %v1087
    %v1465 = vunpack.c.h.b16 %v1087
    %v1466 = vunpack.c.l.b16 %v1088
    %v1467 = vunpack.c.h.b16 %v1088
    %v1468 = vunpack.c.l.b16 %v1089
    %v1469 = vunpack.c.h.b16 %v1089
    %v1470 = vunpack.c.l.b16 %v1090
    %v1471 = vunpack.c.h.b16 %v1090
    %v1472 = vunpack.c.l.b16 %v1091
    %v1473 = vunpack.c.h.b16 %v1091
    %v1474 = vunpack.c.l.b16 %v1092
    %v1475 = vunpack.c.h.b16 %v1092
    %v1476 = vunpack.c.l.b16 %v1093
    %v1477 = vunpack.c.h.b16 %v1093
    %v1478 = vpack.c.b16 %v1226, %v1222
    %v1479 = vpack.c.b16 %v1227, %v1223
    %v1480 = vpack.c.b16 %v1228, %v1224
    %v1481 = vpack.c.b16 %v1229, %v1225
    %v1482 = vpack.c.b16 %v1234, %v1230
    %v1483 = vpack.c.b16 %v1235, %v1231
    %v1484 = vpack.c.b16 %v1236, %v1232
    %v1485 = vpack.c.b16 %v1237, %v1233
    %v1486 = vpack.c.b16 %v1242, %v1238
    %v1487 = vpack.c.b16 %v1243, %v1239
    %v1488 = vpack.c.b16 %v1244, %v1240
    %v1489 = vpack.c.b16 %v1245, %v1241
    %v1490 = vpack.c.b16 %v1250, %v1246
    %v1491 = vpack.c.b16 %v1251, %v1247
    %v1492 = vpack.c.b16 %v1252, %v1248
    %v1493 = vpack.c.b16 %v1253, %v1249
    %v1494 = vpack.c.b16 %v1258, %v1254
    %v1495 = vpack.c.b16 %v1259, %v1255
    %v1496 = vpack.c.b16 %v1260, %v1256
    %v1497 = vpack.c.b16 %v1261, %v1257
    %v1498 = vpack.c.b16 %v1266, %v1262
    %v1499 = vpack.c.b16 %v1267, %v1263
    %v1500 = vpack.c.b16 %v1268, %v1264
    %v1501 = vpack.c.b16 %v1269, %v1265
    %v1502 = vpack.c.b16 %v1274, %v1270
    %v1503 = vpack.c.b16 %v1275, %v1271
    %v1504 = vpack.c.b16 %v1276, %v1272
    %v1505 = vpack.c.b16 %v1277, %v1273
    %v1506 = vpack.c.b16 %v1282, %v1278
    %v1507 = vpack.c.b16 %v1283, %v1279
    %v1508 = vpack.c.b16 %v1284, %v1280
    %v1509 = vpack.c.b16 %v1285, %v1281
    %v1510 = vpack.c.b16 %v1290, %v1286
    %v1511 = vpack.c.b16 %v1291, %v1287
    %v1512 = vpack.c.b16 %v1292, %v1288
    %v1513 = vpack.c.b16 %v1293, %v1289
    %v1514 = vpack.c.b16 %v1298, %v1294
    %v1515 = vpack.c.b16 %v1299, %v1295
    %v1516 = vpack.c.b16 %v1300, %v1296
    %v1517 = vpack.c.b16 %v1301, %v1297
    %v1518 = vpack.c.b16 %v1306, %v1302
    %v1519 = vpack.c.b16 %v1307, %v1303
    %v1520 = vpack.c.b16 %v1308, %v1304
    %v1521 = vpack.c.b16 %v1309, %v1305
    %v1522 = vpack.c.b16 %v1314, %v1310
    %v1523 = vpack.c.b16 %v1315, %v1311
    %v1524 = vpack.c.b16 %v1316, %v1312
    %v1525 = vpack.c.b16 %v1317, %v1313
    %v1526 = vpack.c.b16 %v1322, %v1318
    %v1527 = vpack.c.b16 %v1323, %v1319
    %v1528 = vpack.c.b16 %v1324, %v1320
    %v1529 = vpack.c.b16 %v1325, %v1321
    %v1530 = vpack.c.b16 %v1330, %v1326
    %v1531 = vpack.c.b16 %v1331, %v1327
    %v1532 = vpack.c.b16 %v1332, %v1328
    %v1533 = vpack.c.b16 %v1333, %v1329
    %v1534 = vpack.c.b16 %v1338, %v1334
    %v1535 = vpack.c.b16 %v1339, %v1335
    %v1536 = vpack.c.b16 %v1340, %v1336
    %v1537 = vpack.c.b16 %v1341, %v1337
    %v1538 = vpack.c.b16 %v1346, %v1342
    %v1539 = vpack.c.b16 %v1347, %v1343
    %v1540 = vpack.c.b16 %v1348, %v1344
    %v1541 = vpack.c.b16 %v1349, %v1345
    %v1542 = vpack.c.b16 %v1354, %v1350
    %v1543 = vpack.c.b16 %v1355, %v1351
    %v1544 = vpack.c.b16 %v1356, %v1352
    %v1545 = vpack.c.b16 %v1357, %v1353
    %v1546 = vpack.c.b16 %v1362, %v1358
    %v1547 = vpack.c.b16 %v1363, %v1359
    %v1548 = vpack.c.b16 %v1364, %v1360
    %v1549 = vpack.c.b16 %v1365, %v1361
    %v1550 = vpack.c.b16 %v1370, %v1366
    %v1551 = vpack.c.b16 %v1371, %v1367
    %v1552 = vpack.c.b16 %v1372, %v1368
    %v1553 = vpack.c.b16 %v1373, %v1369
    %v1554 = vpack.c.b16 %v1378, %v1374
    %v1555 = vpack.c.b16 %v1379, %v1375
    %v1556 = vpack.c.b16 %v1380, %v1376
    %v1557 = vpack.c.b16 %v1381, %v1377
    %v1558 = vpack.c.b16 %v1386, %v1382
    %v1559 = vpack.c.b16 %v1387, %v1383
    %v1560 = vpack.c.b16 %v1388, %v1384
    %v1561 = vpack.c.b16 %v1389, %v1385
    %v1562 = vpack.c.b16 %v1394, %v1390
    %v1563 = vpack.c.b16 %v1395, %v1391
    %v1564 = vpack.c.b16 %v1396, %v1392
    %v1565 = vpack.c.b16 %v1397, %v1393
    %v1566 = vpack.c.b16 %v1402, %v1398
    %v1567 = vpack.c.b16 %v1403, %v1399
    %v1568 = vpack.c.b16 %v1404, %v1400
    %v1569 = vpack.c.b16 %v1405, %v1401
    %v1570 = vpack.c.b16 %v1410, %v1406
    %v1571 = vpack.c.b16 %v1411, %v1407
    %v1572 = vpack.c.b16 %v1412, %v1408
    %v1573 = vpack.c.b16 %v1413, %v1409
    %v1574 = vpack.c.b16 %v1418, %v1414
    %v1575 = vpack.c.b16 %v1419, %v1415
    %v1576 = vpack.c.b16 %v1420, %v1416
    %v1577 = vpack.c.b16 %v1421, %v1417
    %v1578 = vpack.c.b16 %v1426, %v1422
    %v1579 = vpack.c.b16 %v1427, %v1423
    %v1580 = vpack.c.b16 %v1428, %v1424
    %v1581 = vpack.c.b16 %v1429, %v1425
    %v1582 = vpack.c.b16 %v1434, %v1430
    %v1583 = vpack.c.b16 %v1435, %v1431
    %v1584 = vpack.c.b16 %v1436, %v1432
    %v1585 = vpack.c.b16 %v1437, %v1433
    %v1586 = vpack.c.b16 %v1442, %v1438
    %v1587 = vpack.c.b16 %v1443, %v1439
    %v1588 = vpack.c.b16 %v1444, %v1440
    %v1589 = vpack.c.b16 %v1445, %v1441
    %v1590 = vpack.c.b16 %v1450, %v1446
    %v1591 = vpack.c.b16 %v1451, %v1447
    %v1592 = vpack.c.b16 %v1452, %v1448
    %v1593 = vpack.c.b16 %v1453, %v1449
    %v1594 = vpack.c.b16 %v1458, %v1454
    %v1595 = vpack.c.b16 %v1459, %v1455
    %v1596 = vpack.c.b16 %v1460, %v1456
    %v1597 = vpack.c.b16 %v1461, %v1457
    %v1598 = vpack.c.b16 %v1466, %v1462
    %v1599 = vpack.c.b16 %v1467, %v1463
    %v1600 = vpack.c.b16 %v1468, %v1464
    %v1601 = vpack.c.b16 %v1469, %v1465
    %v1602 = vpack.c.b16 %v1474, %v1470
    %v1603 = vpack.c.b16 %v1475, %v1471
    %v1604 = vpack.c.b16 %v1476, %v1472
    %v1605 = vpack.c.b16 %v1477, %v1473
    %1734 = vmatprep.subr.bf16.mxu0 %v1507
    %1735 = vmatpush1.bf16.msra.mxu0 %v1506
    %1736 = vmatprep.subr.bf16.mxu0 %v1503
    %1737 = vmatpush1.bf16.msra.mxu0 %v1502
    %1738 = vmatprep.subr.bf16.mxu0 %v1499
    %1739 = vmatpush1.bf16.msra.mxu0 %v1498
    %1740 = vmatprep.subr.bf16.mxu0 %v1495
    %1741 = vmatpush1.bf16.msra.mxu0 %v1494
    %1742 = vmatprep.subr.bf16.mxu0 %v1491
    %1743 = vmatpush1.bf16.msra.mxu0 %v1490
    %1744 = vmatprep.subr.bf16.mxu0 %v1487
    %1745 = vmatpush1.bf16.msra.mxu0 %v1486
    %1746 = vmatprep.subr.bf16.mxu0 %v1483
    %1747 = vmatpush1.bf16.msra.mxu0 %v1482
    %1748 = vmatprep.subr.bf16.mxu0 %v1479
    %1749 = vmatpush1.bf16.msra.mxu0 %v1478
    %1750 = vmatprep.subr.bf16.mxu0 %v1539
    %1751 = vmatpush2.bf16.msra.mxu0 %v1538
    %1752 = vmatprep.subr.bf16.mxu0 %v1535
    %1753 = vmatpush2.bf16.msra.mxu0 %v1534
    %1754 = vmatprep.subr.bf16.mxu0 %v1531
    %1755 = vmatpush2.bf16.msra.mxu0 %v1530
    %1756 = vmatprep.subr.bf16.mxu0 %v1527
    %1757 = vmatpush2.bf16.msra.mxu0 %v1526
    %1758 = vmatprep.subr.bf16.mxu0 %v1523
    %1759 = vmatpush2.bf16.msra.mxu0 %v1522
    %1760 = vmatprep.subr.bf16.mxu0 %v1519
    %1761 = vmatpush2.bf16.msra.mxu0 %v1518
    %1762 = vmatprep.subr.bf16.mxu0 %v1515
    %1763 = vmatpush2.bf16.msra.mxu0 %v1514
    %1764 = vmatprep.subr.bf16.mxu0 %v1511
    %1765 = vmatpush2.bf16.msra.mxu0 %v1510
    %1766 = vmatprep.mubr.bf16.mxu0 %v963
    %1767 = vmatmul.mubr.bf16.gmra.mxu0 %v962
    %v1768 = vpop.f32.mrf.mxu0
    %v1769 = vadd.f32 0.0, %v1768
    %v1770 = vpop.f32.mrf.mxu0
    %v1771 = vadd.f32 0.0, %v1770
    %v1772 = vpop.f32.mrf.mxu0
    %v1773 = vpop.f32.mrf.mxu0
    %1774 = vdwg.mxu0
    %1775 = vmatprep.subr.bf16.mxu0 %v1571
    %1776 = vmatpush1.bf16.msra.mxu0 %v1570
    %1777 = vmatprep.subr.bf16.mxu0 %v1567
    %1778 = vmatpush1.bf16.msra.mxu0 %v1566
    %1779 = vmatprep.subr.bf16.mxu0 %v1563
    %1780 = vmatpush1.bf16.msra.mxu0 %v1562
    %1781 = vmatprep.subr.bf16.mxu0 %v1559
    %1782 = vmatpush1.bf16.msra.mxu0 %v1558
    %1783 = vmatprep.subr.bf16.mxu0 %v1555
    %1784 = vmatpush1.bf16.msra.mxu0 %v1554
    %1785 = vmatprep.subr.bf16.mxu0 %v1551
    %1786 = vmatpush1.bf16.msra.mxu0 %v1550
    %1787 = vmatprep.subr.bf16.mxu0 %v1547
    %1788 = vmatpush1.bf16.msra.mxu0 %v1546
    %1789 = vmatprep.subr.bf16.mxu0 %v1543
    %1790 = vmatpush1.bf16.msra.mxu0 %v1542
    %1791 = vmatprep.subr.bf16.mxu0 %v1603
    %1792 = vmatpush2.bf16.msra.mxu0 %v1602
    %1793 = vmatprep.subr.bf16.mxu0 %v1599
    %1794 = vmatpush2.bf16.msra.mxu0 %v1598
    %1795 = vmatprep.subr.bf16.mxu0 %v1595
    %1796 = vmatpush2.bf16.msra.mxu0 %v1594
    %1797 = vmatprep.subr.bf16.mxu0 %v1591
    %1798 = vmatpush2.bf16.msra.mxu0 %v1590
    %1799 = vmatprep.subr.bf16.mxu0 %v1587
    %1800 = vmatpush2.bf16.msra.mxu0 %v1586
    %1801 = vmatprep.subr.bf16.mxu0 %v1583
    %1802 = vmatpush2.bf16.msra.mxu0 %v1582
    %1803 = vmatprep.subr.bf16.mxu0 %v1579
    %1804 = vmatpush2.bf16.msra.mxu0 %v1578
    %1805 = vmatprep.subr.bf16.mxu0 %v1575
    %1806 = vmatpush2.bf16.msra.mxu0 %v1574
    %1807 = vmatprep.mubr.bf16.mxu0 %v965
    %1808 = vmatmul.mubr.bf16.gmra.mxu0 %v964
    %v1809 = vpop.f32.mrf.mxu0
    %v1810 = vadd.f32 %v1769, %v1809
    %v1811 = vpop.f32.mrf.mxu0
    %v1812 = vadd.f32 %v1771, %v1811
    %v1813 = vpop.f32.mrf.mxu0
    %v1814 = vpop.f32.mrf.mxu0
    %1815 = vdwg.mxu0
    %1816 = vmatprep.subr.bf16.mxu0 %v1509
    %1817 = vmatpush1.bf16.msra.mxu0 %v1508
    %1818 = vmatprep.subr.bf16.mxu0 %v1505
    %1819 = vmatpush1.bf16.msra.mxu0 %v1504
    %1820 = vmatprep.subr.bf16.mxu0 %v1501
    %1821 = vmatpush1.bf16.msra.mxu0 %v1500
    %1822 = vmatprep.subr.bf16.mxu0 %v1497
    %1823 = vmatpush1.bf16.msra.mxu0 %v1496
    %1824 = vmatprep.subr.bf16.mxu0 %v1493
    %1825 = vmatpush1.bf16.msra.mxu0 %v1492
    %1826 = vmatprep.subr.bf16.mxu0 %v1489
    %1827 = vmatpush1.bf16.msra.mxu0 %v1488
    %1828 = vmatprep.subr.bf16.mxu0 %v1485
    %1829 = vmatpush1.bf16.msra.mxu0 %v1484
    %1830 = vmatprep.subr.bf16.mxu0 %v1481
    %1831 = vmatpush1.bf16.msra.mxu0 %v1480
    %1832 = vmatprep.subr.bf16.mxu0 %v1541
    %1833 = vmatpush2.bf16.msra.mxu0 %v1540
    %1834 = vmatprep.subr.bf16.mxu0 %v1537
    %1835 = vmatpush2.bf16.msra.mxu0 %v1536
    %1836 = vmatprep.subr.bf16.mxu0 %v1533
    %1837 = vmatpush2.bf16.msra.mxu0 %v1532
    %1838 = vmatprep.subr.bf16.mxu0 %v1529
    %1839 = vmatpush2.bf16.msra.mxu0 %v1528
    %1840 = vmatprep.subr.bf16.mxu0 %v1525
    %1841 = vmatpush2.bf16.msra.mxu0 %v1524
    %1842 = vmatprep.subr.bf16.mxu0 %v1521
    %1843 = vmatpush2.bf16.msra.mxu0 %v1520
    %1844 = vmatprep.subr.bf16.mxu0 %v1517
    %1845 = vmatpush2.bf16.msra.mxu0 %v1516
    %1846 = vmatprep.subr.bf16.mxu0 %v1513
    %1847 = vmatpush2.bf16.msra.mxu0 %v1512
    %1848 = vmatprep.mubr.bf16.mxu0 %v963
    %1849 = vmatmul.mubr.bf16.gmra.mxu0 %v962
    %v1850 = vpop.f32.mrf.mxu0
    %v1851 = vadd.f32 0.0, %v1850
    %v1852 = vpop.f32.mrf.mxu0
    %v1853 = vadd.f32 0.0, %v1852
    %v1854 = vpop.f32.mrf.mxu0
    %v1855 = vpop.f32.mrf.mxu0
    %1856 = vdwg.mxu0
    %1857 = vmatprep.subr.bf16.mxu0 %v1573
    %1858 = vmatpush1.bf16.msra.mxu0 %v1572
    %1859 = vmatprep.subr.bf16.mxu0 %v1569
    %1860 = vmatpush1.bf16.msra.mxu0 %v1568
    %1861 = vmatprep.subr.bf16.mxu0 %v1565
    %1862 = vmatpush1.bf16.msra.mxu0 %v1564
    %1863 = vmatprep.subr.bf16.mxu0 %v1561
    %1864 = vmatpush1.bf16.msra.mxu0 %v1560
    %1865 = vmatprep.subr.bf16.mxu0 %v1557
    %1866 = vmatpush1.bf16.msra.mxu0 %v1556
    %1867 = vmatprep.subr.bf16.mxu0 %v1553
    %1868 = vmatpush1.bf16.msra.mxu0 %v1552
    %1869 = vmatprep.subr.bf16.mxu0 %v1549
    %1870 = vmatpush1.bf16.msra.mxu0 %v1548
    %1871 = vmatprep.subr.bf16.mxu0 %v1545
    %1872 = vmatpush1.bf16.msra.mxu0 %v1544
    %1873 = vmatprep.subr.bf16.mxu0 %v1605
    %1874 = vmatpush2.bf16.msra.mxu0 %v1604
    %1875 = vmatprep.subr.bf16.mxu0 %v1601
    %1876 = vmatpush2.bf16.msra.mxu0 %v1600
    %1877 = vmatprep.subr.bf16.mxu0 %v1597
    %1878 = vmatpush2.bf16.msra.mxu0 %v1596
    %1879 = vmatprep.subr.bf16.mxu0 %v1593
    %1880 = vmatpush2.bf16.msra.mxu0 %v1592
    %1881 = vmatprep.subr.bf16.mxu0 %v1589
    %1882 = vmatpush2.bf16.msra.mxu0 %v1588
    %1883 = vmatprep.subr.bf16.mxu0 %v1585
    %1884 = vmatpush2.bf16.msra.mxu0 %v1584
    %1885 = vmatprep.subr.bf16.mxu0 %v1581
    %1886 = vmatpush2.bf16.msra.mxu0 %v1580
    %1887 = vmatprep.subr.bf16.mxu0 %v1577
    %1888 = vmatpush2.bf16.msra.mxu0 %v1576
    %1889 = vmatprep.mubr.bf16.mxu0 %v965
    %1890 = vmatmul.mubr.bf16.gmra.mxu0 %v964
    %v1891 = vpop.f32.mrf.mxu0
    %v1892 = vadd.f32 %v1851, %v1891
    %v1893 = vpop.f32.mrf.mxu0
    %v1894 = vadd.f32 %v1853, %v1893
    %v1895 = vpop.f32.mrf.mxu0
    %v1896 = vpop.f32.mrf.mxu0
    %1897 = vdwg.mxu0
    %v1898 = vld [vmem:[%s8] sm:$0xf]
    %v1899 = vld [vmem:[%s9] sm:$0xf]
    %v1900 = vrot.slane %v1810, 4
    %v1901 = vadd.f32 %v1810, %v1900
    %v1902 = vrot.slane %v1901, 2
    %v1903 = vadd.f32 %v1901, %v1902
    %v1904 = vrot.slane %v1903, 1
    %v1905 = vadd.f32 %v1903, %v1904
    %v1906 = vrot.slane %v1812, 4
    %v1907 = vadd.f32 %v1812, %v1906
    %v1908 = vrot.slane %v1907, 2
    %v1909 = vadd.f32 %v1907, %v1908
    %v1910 = vrot.slane %v1909, 1
    %v1911 = vadd.f32 %v1909, %v1910
    %v1912 = vrot.slane %v1892, 4
    %v1913 = vadd.f32 %v1892, %v1912
    %v1914 = vrot.slane %v1913, 2
    %v1915 = vadd.f32 %v1913, %v1914
    %v1916 = vrot.slane %v1915, 1
    %v1917 = vadd.f32 %v1915, %v1916
    %v1918 = vrot.slane %v1894, 4
    %v1919 = vadd.f32 %v1894, %v1918
    %v1920 = vrot.slane %v1919, 2
    %v1921 = vadd.f32 %v1919, %v1920
    %v1922 = vrot.slane %v1921, 1
    %v1923 = vadd.f32 %v1921, %v1922
    %v1924 = vmul.f32 %v1905, 0.125
    %v1925 = vmul.f32 %v1911, 0.125
    %v1926 = vmul.f32 %v1917, 0.125
    %v1927 = vmul.f32 %v1923, 0.125
    %v1928 = vmul.f32 %v1810, %v1810
    %v1929 = vmul.f32 %v1812, %v1812
    %v1930 = vmul.f32 %v1892, %v1892
    %v1931 = vmul.f32 %v1894, %v1894
    %v1932 = vrot.slane %v1928, 4
    %v1933 = vadd.f32 %v1928, %v1932
    %v1934 = vrot.slane %v1933, 2
    %v1935 = vadd.f32 %v1933, %v1934
    %v1936 = vrot.slane %v1935, 1
    %v1937 = vadd.f32 %v1935, %v1936
    %v1938 = vrot.slane %v1929, 4
    %v1939 = vadd.f32 %v1929, %v1938
    %v1940 = vrot.slane %v1939, 2
    %v1941 = vadd.f32 %v1939, %v1940
    %v1942 = vrot.slane %v1941, 1
    %v1943 = vadd.f32 %v1941, %v1942
    %v1944 = vrot.slane %v1930, 4
    %v1945 = vadd.f32 %v1930, %v1944
    %v1946 = vrot.slane %v1945, 2
    %v1947 = vadd.f32 %v1945, %v1946
    %v1948 = vrot.slane %v1947, 1
    %v1949 = vadd.f32 %v1947, %v1948
    %v1950 = vrot.slane %v1931, 4
    %v1951 = vadd.f32 %v1931, %v1950
    %v1952 = vrot.slane %v1951, 2
    %v1953 = vadd.f32 %v1951, %v1952
    %v1954 = vrot.slane %v1953, 1
    %v1955 = vadd.f32 %v1953, %v1954
    %v1956 = vmul.f32 %v1937, 0.125
    %v1957 = vmul.f32 %v1943, 0.125
    %v1958 = vmul.f32 %v1949, 0.125
    %v1959 = vmul.f32 %v1955, 0.125
    %v1960 = vmul.f32 %v1924, %v1924
    %v1961 = vmul.f32 %v1925, %v1925
    %v1962 = vmul.f32 %v1926, %v1926
    %v1963 = vmul.f32 %v1927, %v1927
    %v1964 = vsub.f32 %v1956, %v1960
    %v1965 = vsub.f32 %v1957, %v1961
    %v1966 = vsub.f32 %v1958, %v1962
    %v1967 = vsub.f32 %v1959, %v1963
    %v1968 = vmax.f32 %v1964, 0.0
    %v1969 = vmax.f32 %v1965, 0.0
    %v1970 = vmax.f32 %v1966, 0.0
    %v1971 = vmax.f32 %v1967, 0.0
    %v1972 = vadd.f32 %v1968, 1e-05
    %v1973 = vadd.f32 %v1969, 1e-05
    %v1974 = vadd.f32 %v1970, 1e-05
    %v1975 = vadd.f32 %v1971, 1e-05
    %v1976 = vrsqrt.pop %v1972
    %v1977 = vrsqrt.pop %v1973
    %v1978 = vrsqrt.pop %v1974
    %v1979 = vrsqrt.pop %v1975
    %v1981 = vlaneseq
    %v1982 = vshrl.u32 %v1981, 7
    %v1983 = vsub.s32 0, %v1982
    %v1984 = vrot.slane %v1898, %v1983
    %v1985 = vlaneseq
    %v1986 = vshrl.u32 %v1985, 7
    %v1987 = vsub.s32 1, %v1986
    %v1988 = vrot.slane %v1898, %v1987
    %v1989 = vlaneseq
    %v1990 = vshrl.u32 %v1989, 7
    %v1991 = vsub.s32 2, %v1990
    %v1992 = vrot.slane %v1898, %v1991
    %v1993 = vlaneseq
    %v1994 = vshrl.u32 %v1993, 7
    %v1995 = vsub.s32 3, %v1994
    %v1996 = vrot.slane %v1898, %v1995
    %v2001 = vmul.f32 %v1976, %v1984
    %v2002 = vmul.f32 %v1977, %v1988
    %v2003 = vmul.f32 %v1978, %v1992
    %v2004 = vmul.f32 %v1979, %v1996
    %v2005 = vmul.f32 %v1924, %v2001
    %v2006 = vmul.f32 %v1925, %v2002
    %v2007 = vmul.f32 %v1926, %v2003
    %v2008 = vmul.f32 %v1927, %v2004
    %v2013 = vcombine.low %v2005, %v2006
    %v2014 = vcombine.low %v2007, %v2008
    %v2016 = vunpack.c.l.s4 1966171168
    %v2017 = vunpack.c.0.s8 %v2016
    %v2018 = vlaneseq
    %v2019 = vshrl.u32 %v2018, 7
    %v2020 = vsub.s32 %v2017, %v2019
    %v2021 = vrot.slane %v2013, %v2020
    %v2023 = vunpack.c.l.s4 1966171168
    %v2024 = vunpack.c.0.s8 %v2023
    %v2025 = vlaneseq
    %v2026 = vshrl.u32 %v2025, 7
    %v2027 = vsub.s32 %v2024, %v2026
    %v2028 = vrot.slane %v2014, %v2027
    %v2029 = vcombine.low %v2021, %v2028
    %v2031 = vunpack.c.l.s4 1966171168
    %v2032 = vunpack.c.0.s8 %v2031
    %v2033 = vlaneseq
    %v2034 = vshrl.u32 %v2033, 7
    %v2035 = vsub.s32 %v2032, %v2034
    %v2036 = vrot.slane %v2029, %v2035
    %v2038 = vsub.f32 %v1899, %v2036
    %v2039 = vlaneseq
    %v2040 = vshrl.u32 %v2039, 7
    %v2041 = vsub.s32 0, %v2040
    %v2042 = vrot.slane %v2001, %v2041
    %v2043 = vlaneseq
    %v2044 = vshrl.u32 %v2043, 7
    %v2045 = vsub.s32 0, %v2044
    %v2046 = vrot.slane %v2002, %v2045
    %v2047 = vlaneseq
    %v2048 = vshrl.u32 %v2047, 7
    %v2049 = vsub.s32 0, %v2048
    %v2050 = vrot.slane %v2003, %v2049
    %v2051 = vlaneseq
    %v2052 = vshrl.u32 %v2051, 7
    %v2053 = vsub.s32 0, %v2052
    %v2054 = vrot.slane %v2004, %v2053
    %v2055 = vmul.f32 %v1810, %v2042
    %v2056 = vmul.f32 %v1812, %v2046
    %v2057 = vmul.f32 %v1892, %v2050
    %v2058 = vmul.f32 %v1894, %v2054
    %v2060 = vlaneseq
    %v2061 = vshrl.u32 %v2060, 7
    %v2062 = vsub.s32 0, %v2061
    %v2063 = vrot.slane %v2038, %v2062
    %v2064 = vlaneseq
    %v2065 = vshrl.u32 %v2064, 7
    %v2066 = vsub.s32 1, %v2065
    %v2067 = vrot.slane %v2038, %v2066
    %v2068 = vlaneseq
    %v2069 = vshrl.u32 %v2068, 7
    %v2070 = vsub.s32 2, %v2069
    %v2071 = vrot.slane %v2038, %v2070
    %v2072 = vlaneseq
    %v2073 = vshrl.u32 %v2072, 7
    %v2074 = vsub.s32 3, %v2073
    %v2075 = vrot.slane %v2038, %v2074
    %v2080 = vadd.f32 %v2055, %v2063
    %v2081 = vadd.f32 %v2056, %v2067
    %v2082 = vadd.f32 %v2057, %v2071
    %v2083 = vadd.f32 %v2058, %v2075
    %v2084 = vmax.f32 %v2080, 0.0
    %v2085 = vmax.f32 %v2081, 0.0
    %v2086 = vmax.f32 %v2082, 0.0
    %v2087 = vmax.f32 %v2083, 0.0
    %v2088 = vpack.c.bf16 %v2084, %v2084
    %v2089 = vpack.c.bf16 %v2085, %v2085
    %v2090 = vpack.c.bf16 %v2086, %v2086
    %v2091 = vpack.c.bf16 %v2087, %v2087
    %v2092 = vld [vmem:[#allocation13] sm:$0xf]
    %v2093 = vld [vmem:[#allocation13 + $0x4] sm:$0xf]
    %v2094 = vld [vmem:[#allocation13 + $0x8] sm:$0xf]
    %v2095 = vld [vmem:[#allocation13 + $0xc] sm:$0xf]
    %v2096 = vld [vmem:[#allocation13 + $0x10] sm:$0xf]
    %v2097 = vld [vmem:[#allocation13 + $0x14] sm:$0xf]
    %v2098 = vld [vmem:[#allocation13 + $0x18] sm:$0xf]
    %v2099 = vld [vmem:[#allocation13 + $0x1c] sm:$0xf]
    %v2100 = vld [vmem:[#allocation13 + $0x20] sm:$0xf]
    %v2101 = vld [vmem:[#allocation13 + $0x24] sm:$0xf]
    %v2102 = vld [vmem:[#allocation13 + $0x28] sm:$0xf]
    %v2103 = vld [vmem:[#allocation13 + $0x2c] sm:$0xf]
    %v2104 = vld [vmem:[#allocation13 + $0x30] sm:$0xf]
    %v2105 = vld [vmem:[#allocation13 + $0x34] sm:$0xf]
    %v2106 = vld [vmem:[#allocation13 + $0x38] sm:$0xf]
    %v2107 = vld [vmem:[#allocation13 + $0x3c] sm:$0xf]
    %v2108 = vld [vmem:[#allocation13 + $0x40] sm:$0xf]
    %v2109 = vld [vmem:[#allocation13 + $0x44] sm:$0xf]
    %v2110 = vld [vmem:[#allocation13 + $0x48] sm:$0xf]
    %v2111 = vld [vmem:[#allocation13 + $0x4c] sm:$0xf]
    %v2112 = vld [vmem:[#allocation13 + $0x50] sm:$0xf]
    %v2113 = vld [vmem:[#allocation13 + $0x54] sm:$0xf]
    %v2114 = vld [vmem:[#allocation13 + $0x58] sm:$0xf]
    %v2115 = vld [vmem:[#allocation13 + $0x5c] sm:$0xf]
    %v2116 = vld [vmem:[#allocation13 + $0x60] sm:$0xf]
    %v2117 = vld [vmem:[#allocation13 + $0x64] sm:$0xf]
    %v2118 = vld [vmem:[#allocation13 + $0x68] sm:$0xf]
    %v2119 = vld [vmem:[#allocation13 + $0x6c] sm:$0xf]
    %v2120 = vld [vmem:[#allocation13 + $0x70] sm:$0xf]
    %v2121 = vld [vmem:[#allocation13 + $0x74] sm:$0xf]
    %v2122 = vld [vmem:[#allocation13 + $0x78] sm:$0xf]
    %v2123 = vld [vmem:[#allocation13 + $0x7c] sm:$0xf]
    %v2124 = vld [vmem:[#allocation13 + $0x80] sm:$0xf]
    %v2125 = vld [vmem:[#allocation13 + $0x84] sm:$0xf]
    %v2126 = vld [vmem:[#allocation13 + $0x88] sm:$0xf]
    %v2127 = vld [vmem:[#allocation13 + $0x8c] sm:$0xf]
    %v2128 = vld [vmem:[#allocation13 + $0x90] sm:$0xf]
    %v2129 = vld [vmem:[#allocation13 + $0x94] sm:$0xf]
    %v2130 = vld [vmem:[#allocation13 + $0x98] sm:$0xf]
    %v2131 = vld [vmem:[#allocation13 + $0x9c] sm:$0xf]
    %v2132 = vld [vmem:[#allocation13 + $0xa0] sm:$0xf]
    %v2133 = vld [vmem:[#allocation13 + $0xa4] sm:$0xf]
    %v2134 = vld [vmem:[#allocation13 + $0xa8] sm:$0xf]
    %v2135 = vld [vmem:[#allocation13 + $0xac] sm:$0xf]
    %v2136 = vld [vmem:[#allocation13 + $0xb0] sm:$0xf]
    %v2137 = vld [vmem:[#allocation13 + $0xb4] sm:$0xf]
    %v2138 = vld [vmem:[#allocation13 + $0xb8] sm:$0xf]
    %v2139 = vld [vmem:[#allocation13 + $0xbc] sm:$0xf]
    %v2140 = vld [vmem:[#allocation13 + $0xc0] sm:$0xf]
    %v2141 = vld [vmem:[#allocation13 + $0xc4] sm:$0xf]
    %v2142 = vld [vmem:[#allocation13 + $0xc8] sm:$0xf]
    %v2143 = vld [vmem:[#allocation13 + $0xcc] sm:$0xf]
    %v2144 = vld [vmem:[#allocation13 + $0xd0] sm:$0xf]
    %v2145 = vld [vmem:[#allocation13 + $0xd4] sm:$0xf]
    %v2146 = vld [vmem:[#allocation13 + $0xd8] sm:$0xf]
    %v2147 = vld [vmem:[#allocation13 + $0xdc] sm:$0xf]
    %v2148 = vld [vmem:[#allocation13 + $0xe0] sm:$0xf]
    %v2149 = vld [vmem:[#allocation13 + $0xe4] sm:$0xf]
    %v2150 = vld [vmem:[#allocation13 + $0xe8] sm:$0xf]
    %v2151 = vld [vmem:[#allocation13 + $0xec] sm:$0xf]
    %v2152 = vld [vmem:[#allocation13 + $0xf0] sm:$0xf]
    %v2153 = vld [vmem:[#allocation13 + $0xf4] sm:$0xf]
    %v2154 = vld [vmem:[#allocation13 + $0xf8] sm:$0xf]
    %v2155 = vld [vmem:[#allocation13 + $0xfc] sm:$0xf]
    %v2156 = vld [vmem:[%s11] sm:$0x1]
    %v2158 = vlaneseq
    %v2159 = vshrl.u32 %v2158, 7
    %v2160 = vsub.s32 0, %v2159
    %v2161 = vrot.slane %v2156, %v2160
    %v2227 = vunpack.c.l.b16 %v2092
    %v2228 = vunpack.c.l.b16 %v2093
    %v2229 = vunpack.c.l.b16 %v2094
    %v2230 = vunpack.c.l.b16 %v2095
    %v2231 = vunpack.c.l.b16 %v2096
    %v2232 = vunpack.c.l.b16 %v2097
    %v2233 = vunpack.c.l.b16 %v2098
    %v2234 = vunpack.c.l.b16 %v2099
    %v2235 = vunpack.c.l.b16 %v2100
    %v2236 = vunpack.c.l.b16 %v2101
    %v2237 = vunpack.c.l.b16 %v2102
    %v2238 = vunpack.c.l.b16 %v2103
    %v2239 = vunpack.c.l.b16 %v2104
    %v2240 = vunpack.c.l.b16 %v2105
    %v2241 = vunpack.c.l.b16 %v2106
    %v2242 = vunpack.c.l.b16 %v2107
    %v2243 = vunpack.c.l.b16 %v2108
    %v2244 = vunpack.c.l.b16 %v2109
    %v2245 = vunpack.c.l.b16 %v2110
    %v2246 = vunpack.c.l.b16 %v2111
    %v2247 = vunpack.c.l.b16 %v2112
    %v2248 = vunpack.c.l.b16 %v2113
    %v2249 = vunpack.c.l.b16 %v2114
    %v2250 = vunpack.c.l.b16 %v2115
    %v2251 = vunpack.c.l.b16 %v2116
    %v2252 = vunpack.c.l.b16 %v2117
    %v2253 = vunpack.c.l.b16 %v2118
    %v2254 = vunpack.c.l.b16 %v2119
    %v2255 = vunpack.c.l.b16 %v2120
    %v2256 = vunpack.c.l.b16 %v2121
    %v2257 = vunpack.c.l.b16 %v2122
    %v2258 = vunpack.c.l.b16 %v2123
    %v2259 = vunpack.c.l.b16 %v2124
    %v2260 = vunpack.c.l.b16 %v2125
    %v2261 = vunpack.c.l.b16 %v2126
    %v2262 = vunpack.c.l.b16 %v2127
    %v2263 = vunpack.c.l.b16 %v2128
    %v2264 = vunpack.c.l.b16 %v2129
    %v2265 = vunpack.c.l.b16 %v2130
    %v2266 = vunpack.c.l.b16 %v2131
    %v2267 = vunpack.c.l.b16 %v2132
    %v2268 = vunpack.c.l.b16 %v2133
    %v2269 = vunpack.c.l.b16 %v2134
    %v2270 = vunpack.c.l.b16 %v2135
    %v2271 = vunpack.c.l.b16 %v2136
    %v2272 = vunpack.c.l.b16 %v2137
    %v2273 = vunpack.c.l.b16 %v2138
    %v2274 = vunpack.c.l.b16 %v2139
    %v2275 = vunpack.c.l.b16 %v2140
    %v2276 = vunpack.c.l.b16 %v2141
    %v2277 = vunpack.c.l.b16 %v2142
    %v2278 = vunpack.c.l.b16 %v2143
    %v2279 = vunpack.c.l.b16 %v2144
    %v2280 = vunpack.c.l.b16 %v2145
    %v2281 = vunpack.c.l.b16 %v2146
    %v2282 = vunpack.c.l.b16 %v2147
    %v2283 = vunpack.c.l.b16 %v2148
    %v2284 = vunpack.c.l.b16 %v2149
    %v2285 = vunpack.c.l.b16 %v2150
    %v2286 = vunpack.c.l.b16 %v2151
    %v2287 = vunpack.c.l.b16 %v2152
    %v2288 = vunpack.c.l.b16 %v2153
    %v2289 = vunpack.c.l.b16 %v2154
    %v2290 = vunpack.c.l.b16 %v2155
    %v2291 = vpack.c.b16 %v2228, %v2227
    %v2292 = vpack.c.b16 %v2230, %v2229
    %v2293 = vpack.c.b16 %v2232, %v2231
    %v2294 = vpack.c.b16 %v2234, %v2233
    %v2295 = vpack.c.b16 %v2236, %v2235
    %v2296 = vpack.c.b16 %v2238, %v2237
    %v2297 = vpack.c.b16 %v2240, %v2239
    %v2298 = vpack.c.b16 %v2242, %v2241
    %v2299 = vpack.c.b16 %v2244, %v2243
    %v2300 = vpack.c.b16 %v2246, %v2245
    %v2301 = vpack.c.b16 %v2248, %v2247
    %v2302 = vpack.c.b16 %v2250, %v2249
    %v2303 = vpack.c.b16 %v2252, %v2251
    %v2304 = vpack.c.b16 %v2254, %v2253
    %v2305 = vpack.c.b16 %v2256, %v2255
    %v2306 = vpack.c.b16 %v2258, %v2257
    %v2307 = vpack.c.b16 %v2260, %v2259
    %v2308 = vpack.c.b16 %v2262, %v2261
    %v2309 = vpack.c.b16 %v2264, %v2263
    %v2310 = vpack.c.b16 %v2266, %v2265
    %v2311 = vpack.c.b16 %v2268, %v2267
    %v2312 = vpack.c.b16 %v2270, %v2269
    %v2313 = vpack.c.b16 %v2272, %v2271
    %v2314 = vpack.c.b16 %v2274, %v2273
    %v2315 = vpack.c.b16 %v2276, %v2275
    %v2316 = vpack.c.b16 %v2278, %v2277
    %v2317 = vpack.c.b16 %v2280, %v2279
    %v2318 = vpack.c.b16 %v2282, %v2281
    %v2319 = vpack.c.b16 %v2284, %v2283
    %v2320 = vpack.c.b16 %v2286, %v2285
    %v2321 = vpack.c.b16 %v2288, %v2287
    %v2322 = vpack.c.b16 %v2290, %v2289
    %2355 = vmatprep.subr.bf16.mxu0 0
    %2356 = vmatpush1.bf16.msra.mxu0 %v2298
    %2357 = vmatprep.subr.bf16.mxu0 0
    %2358 = vmatpush1.bf16.msra.mxu0 %v2297
    %2359 = vmatprep.subr.bf16.mxu0 0
    %2360 = vmatpush1.bf16.msra.mxu0 %v2296
    %2361 = vmatprep.subr.bf16.mxu0 0
    %2362 = vmatpush1.bf16.msra.mxu0 %v2295
    %2363 = vmatprep.subr.bf16.mxu0 0
    %2364 = vmatpush1.bf16.msra.mxu0 %v2294
    %2365 = vmatprep.subr.bf16.mxu0 0
    %2366 = vmatpush1.bf16.msra.mxu0 %v2293
    %2367 = vmatprep.subr.bf16.mxu0 0
    %2368 = vmatpush1.bf16.msra.mxu0 %v2292
    %2369 = vmatprep.subr.bf16.mxu0 0
    %2370 = vmatpush1.bf16.msra.mxu0 %v2291
    %2371 = vmatprep.subr.bf16.mxu0 0
    %2372 = vmatpush2.bf16.msra.mxu0 %v2306
    %2373 = vmatprep.subr.bf16.mxu0 0
    %2374 = vmatpush2.bf16.msra.mxu0 %v2305
    %2375 = vmatprep.subr.bf16.mxu0 0
    %2376 = vmatpush2.bf16.msra.mxu0 %v2304
    %2377 = vmatprep.subr.bf16.mxu0 0
    %2378 = vmatpush2.bf16.msra.mxu0 %v2303
    %2379 = vmatprep.subr.bf16.mxu0 0
    %2380 = vmatpush2.bf16.msra.mxu0 %v2302
    %2381 = vmatprep.subr.bf16.mxu0 0
    %2382 = vmatpush2.bf16.msra.mxu0 %v2301
    %2383 = vmatprep.subr.bf16.mxu0 0
    %2384 = vmatpush2.bf16.msra.mxu0 %v2300
    %2385 = vmatprep.subr.bf16.mxu0 0
    %2386 = vmatpush2.bf16.msra.mxu0 %v2299
    %2387 = vmatprep.mubr.bf16.mxu0 %v2089
    %2388 = vmatmul.mubr.bf16.gmra.mxu0 %v2088
    %v2389 = vpop.f32.mrf.mxu0
    %v2390 = vadd.f32 %v2161, %v2389
    %v2391 = vpop.f32.mrf.mxu0
    %v2392 = vpop.f32.mrf.mxu0
    %v2393 = vpop.f32.mrf.mxu0
    %2394 = vdwg.mxu0
    %2395 = vmatprep.subr.bf16.mxu0 0
    %2396 = vmatpush1.bf16.msra.mxu0 %v2314
    %2397 = vmatprep.subr.bf16.mxu0 0
    %2398 = vmatpush1.bf16.msra.mxu0 %v2313
    %2399 = vmatprep.subr.bf16.mxu0 0
    %2400 = vmatpush1.bf16.msra.mxu0 %v2312
    %2401 = vmatprep.subr.bf16.mxu0 0
    %2402 = vmatpush1.bf16.msra.mxu0 %v2311
    %2403 = vmatprep.subr.bf16.mxu0 0
    %2404 = vmatpush1.bf16.msra.mxu0 %v2310
    %2405 = vmatprep.subr.bf16.mxu0 0
    %2406 = vmatpush1.bf16.msra.mxu0 %v2309
    %2407 = vmatprep.subr.bf16.mxu0 0
    %2408 = vmatpush1.bf16.msra.mxu0 %v2308
    %2409 = vmatprep.subr.bf16.mxu0 0
    %2410 = vmatpush1.bf16.msra.mxu0 %v2307
    %2411 = vmatprep.subr.bf16.mxu0 0
    %2412 = vmatpush2.bf16.msra.mxu0 %v2322
    %2413 = vmatprep.subr.bf16.mxu0 0
    %2414 = vmatpush2.bf16.msra.mxu0 %v2321
    %2415 = vmatprep.subr.bf16.mxu0 0
    %2416 = vmatpush2.bf16.msra.mxu0 %v2320
    %2417 = vmatprep.subr.bf16.mxu0 0
    %2418 = vmatpush2.bf16.msra.mxu0 %v2319
    %2419 = vmatprep.subr.bf16.mxu0 0
    %2420 = vmatpush2.bf16.msra.mxu0 %v2318
    %2421 = vmatprep.subr.bf16.mxu0 0
    %2422 = vmatpush2.bf16.msra.mxu0 %v2317
    %2423 = vmatprep.subr.bf16.mxu0 0
    %2424 = vmatpush2.bf16.msra.mxu0 %v2316
    %2425 = vmatprep.subr.bf16.mxu0 0
    %2426 = vmatpush2.bf16.msra.mxu0 %v2315
    %2427 = vmatprep.mubr.bf16.mxu0 %v2091
    %2428 = vmatmul.mubr.bf16.gmra.mxu0 %v2090
    %v2429 = vpop.f32.mrf.mxu0
    %v2430 = vadd.f32 %v2390, %v2429
    %v2431 = vpop.f32.mrf.mxu0
    %v2432 = vpop.f32.mrf.mxu0
    %v2433 = vpop.f32.mrf.mxu0
    %2434 = vdwg.mxu0
    %2435 = vmax.xlane.f32.xlu0 %v2430
    %v2436 = vpop.xlane.xlu0 %2435
    %v2437 = vsub.f32 %v2430, %v2436
    %v2438 = vmul.f32 %v2437, 1.442695
    %v2439 = vpow.pop %v2438
    %2440 = vadd.xlane.f32.xlu0 %v2439
    %v2441 = vpop.xlane.xlu0 %2440
    %v2442 = vrcp.pop %v2441
    %v2443 = vmul.f32 %v2441, %v2442
    %v2444 = vsub.f32 2.0, %v2443
    %v2445 = vmul.f32 %v2442, %v2444
    %v2446 = vmul.f32 %v2439, %v2445
    %2447 = vst [vmem:[#allocation14] sm:$0xff] %v2446
    // Predicated region
    $region78: #{tpu_custom_call.1} parent=1 // pred_check
      _
    $region79: #{tpu_custom_call.1} parent=1 // pred_check_branch
      %2449 = sbr.rel (0) target = $region81
    $region80: #{tpu_custom_call.1} parent=1 // pred_region
      %s2451 = ssub.s32 128, 128
      %2452 = vsyncadd [#allocation4], %s2451
      %s2454 = sshll.u32 [#allocation14], 4
      %s2455 = int_to_ptr.vmem [resolvable:$true] %s2454
      %2457 = dma.vmem_to_hbm [thread:$0]  %s2455, 128, %s12, [#allocation4]
    $region81: #{tpu_custom_call.1} parent=1 // pred_fallthru
      _
    // Predicated region
    $region82: #{tpu_custom_call.1} parent=1 // pred_check
      _
    $region83: #{tpu_custom_call.1} parent=1 // pred_check_branch
      %2459 = sbr.rel (0) target = $region85
    $region84: #{tpu_custom_call.1} parent=1 // pred_region
      %2460 = dma.done [#allocation4], 128
    $region85: #{tpu_custom_call.1} parent=1 // pred_fallthru
      _
    %2461 = vsyncpa [#allocation3], 1
    %2462 = vsyncpa [#allocation6], 1
    %2463 = vsyncpa [#allocation9], 1
    %2464 = vsyncpa [#allocation12], 1
    %2465 = vsyncpa [#allocation4], 1

</llo_original>
